<compile_context>
chip_gen: v5e
topology: v5e:2x2
jax: 0.10.0
libtpu: 0.0.40
codegen_flags: <defaults>
</compile_context>

<pallas_src>
import jax
import jax.numpy as jnp
import numpy as np
from jax.experimental import pallas as pl
from jax.experimental.pallas import tpu as pltpu

LN_EPS = 1e-5          # torch.nn.LayerNorm default eps
LEAKY_SLOPE = 0.01     # torch.nn.LeakyReLU default negative_slope

# slot indices inside the packed parameter arrays
(W1T_, W1S_, W2T_, W2S_, WO_) = range(5)                       # (5, Dt, Dt)
(BR_, GR_, BER_, G1T_, BE1T_, G1S_, BE1S_,
 B2T_, B2S_, BO_, GO_, BEO_) = range(12)                       # (12, Dt)


# ----------------------------- small helpers ------------------------------- #
def _round_up(x, m):
    return ((x + m - 1) // m) * m


def _round_down(x, m):
    return (x // m) * m


def _ln_lrelu_host(h, g, b):
    mu = h.mean(-1, keepdims=True)
    var = ((h - mu) ** 2).mean(-1, keepdims=True)
    h = (h - mu) * jax.lax.rsqrt(var + LN_EPS) * g + b
    return jnp.where(h > 0, h, LEAKY_SLOPE * h)


# ----------------------------- parameter packing --------------------------- #
def pack_params(params, matmul_dtype):
    (wt, bt, gt, bet, wr, br, gr, ber,
     w1t, b1t, g1t, be1t, w2t, b2t,
     w1s, b1s, g1s, be1s, w2s, b2s,
     wo, bo, go, beo) = params
    Dt = wt.shape[1]
    # residual halves of the gate weights (the timbre halves are hoisted)
    sq_w = jnp.stack([w1t[Dt:], w1s[Dt:], w2t, w2s, wo]).astype(matmul_dtype)   # (5,Dt,Dt)
    res_w = wr.astype(matmul_dtype)                                             # (Dr,Dt)
    vecs = jnp.stack([br, gr, ber, g1t, be1t, g1s, be1s,
                      b2t, b2s, bo, go, beo]).astype(jnp.float32)               # (12,Dt)
    return sq_w, res_w, vecs


def _hoist_timbre(timbre_emb, params):
    """Per-batch timbre work, done once in the wrapper: (B, 3, Dt) f32."""
    (wt, bt, gt, bet, _wr, _br, _gr, _ber,
     w1t, b1t, _g1t, _be1t, _w2t, _b2t,
     w1s, b1s, _g1s, _be1s, _w2s, _b2s,
     _wo, _bo, _go, _beo) = params
    Dt = wt.shape[1]
    t_in = timbre_emb[:, 0, :].astype(jnp.float32)                 # (B, Dt)
    t = _ln_lrelu_host(t_in @ wt.astype(jnp.float32) + bt, gt, bet)
    tg_t = t @ w1t[:Dt].astype(jnp.float32) + b1t                  # timbre part of tanh gate
    tg_s = t @ w1s[:Dt].astype(jnp.float32) + b1s                  # timbre part of sigmoid gate
    return jnp.stack([t, tg_t, tg_s], axis=1)                      # (B, 3, Dt)


# -------------------------------- kernel ----------------------------------- #
def make_mixer_kernel(matmul_dtype, lane_fold):
    def mixer_kernel(taux_ref, r_ref, sqw_ref, resw_ref, vec_ref, o_ref):
        Dt = sqw_ref.shape[1]

        def vrow(i):                                  # (1, Dt) f32 parameter row
            return vec_ref[pl.ds(i, 1), :]

        def mm(x, w):                                 # MXU matmul, f32 accumulate
            return jnp.dot(x.astype(matmul_dtype), w,
                           preferred_element_type=jnp.float32)

        # TODO: for very small Dt the cross-lane LN reductions could be moved
        # onto the idle MXU via a ones-matmul; kept on the XLU for simplicity.
        def ln_lrelu(h, g_idx, b_idx):                # LayerNorm -> LeakyReLU (f32)
            mu = jnp.mean(h, axis=-1, keepdims=True)
            var = jnp.mean(jnp.square(h - mu), axis=-1, keepdims=True)
            h = (h - mu) * jax.lax.rsqrt(var + LN_EPS) * vrow(g_idx) + vrow(b_idx)
            return jnp.where(h > 0, h, LEAKY_SLOPE * h)

        taux = taux_ref[0].astype(jnp.float32)        # (3, Dt): [t, t-gate_tanh, t-gate_sig]
        t_row = taux[0:1, :]
        tg_t = taux[1:2, :]
        tg_s = taux[2:3, :]

        # residual path: (tile_t, Dr) -> (tile_t, Dt)
        r = ln_lrelu(mm(r_ref[0], resw_ref[...]) + vrow(BR_), GR_, BER_)

        # gated branches: tr @ W1 == (t @ W1[:Dt] + b1) + r @ W1[Dt:]  (exact)
        h_t = ln_lrelu(tg_t + mm(r, sqw_ref[W1T_]), G1T_, BE1T_)
        h_s = ln_lrelu(tg_s + mm(r, sqw_ref[W1S_]), G1S_, BE1S_)

        tanh_tr = jnp.tanh(mm(h_t, sqw_ref[W2T_]) + vrow(B2T_))
        sig_tr = jax.nn.sigmoid(mm(h_s, sqw_ref[W2S_]) + vrow(B2S_))

        r_att = r * tanh_tr * sig_tr
        out = ln_lrelu(mm(t_row + r_att, sqw_ref[WO_]) + vrow(BO_), GO_, BEO_)

        if lane_fold > 1:                             # fold rows into lanes -> unmasked stores
            tile_t = out.shape[0]
            out = out.reshape(tile_t // lane_fold, lane_fold * Dt)
        o_ref[0] = out.astype(o_ref.dtype)

    return mixer_kernel


# ------------------------------- planning ----------------------------------- #
def _vmem_cap_bytes():
    try:
        phys = int(pltpu.get_tpu_info().vmem_capacity_bytes)
    except Exception:
        phys = 64 << 20            # conservative (v7x per-TC physical VMEM)
    return min((phys * 3) // 4, 100 << 20)


def _per_step_vmem(tile_t, Dt, Dr, in_b, out_b, w_b, w_bufs):
    io = 2 * tile_t * Dr * in_b            # residual tile, double-buffered
    io += 2 * tile_t * Dt * out_b          # output tile, double-buffered
    io += 2 * 3 * Dt * 4                   # timbre aux, double-buffered (tiny)
    w = w_bufs * ((5 * Dt * Dt + Dr * Dt) * w_b + 12 * Dt * 4)
    inter = 8 * tile_t * Dt * 4            # f32 intermediates (r, h_t, h_s, ...)
    return io + w + inter


def _plan_time_tiling(T, max_tile, lane_fold):
    """Return (T_pad, tile_t, lane_fold): tile_t | T_pad, sublane/lane legal."""
    step = 8 * lane_fold
    if max_tile < step:                    # VMEM too tight for folding granularity
        lane_fold, step = 1, 8
    if T <= max_tile and T <= 4 * step:    # tiny time axis: one tile per batch
        T_pad = _round_up(T, lane_fold)
        return T_pad, T_pad, lane_fold
    # exact divisors of T that are step-aligned (no padding needed)
    divs = [d for d in range(step, min(max_tile, T) + 1, step) if T % d == 0]
    pref = [d for d in divs if T // d >= 4]          # keep >= 4 steps for overlap
    if pref:
        return T, pref[-1], lane_fold
    if divs:
        return T, divs[-1], lane_fold
    # no aligned divisor: pad T to a multiple of an aligned tile
    tile = max(step, min(_round_down(max_tile, step),
                         max(step, _round_down(max(T // 4, step), step))))
    return _round_up(T, tile), tile, lane_fold


# ------------------------------- wrapper ------------------------------------ #
def timbre_residual_mixer(timbre_emb, residual_emb, params, *,
                          max_time_tile=1024,
                          matmul_dtype=jnp.float32,
                          out_dtype=None,
                          lane_dense_output=True):
    B, _, Dt = timbre_emb.shape
    Br, T, Dr = residual_emb.shape
    assert Br == B
    out_dtype = out_dtype or timbre_emb.dtype

    # per-batch timbre work done once (tiny), packed / pre-cast weights
    t_aux = _hoist_timbre(timbre_emb, params)                         # (B, 3, Dt) f32
    sq_w, res_w, vecs = pack_params(params, matmul_dtype)
    residual = (residual_emb if residual_emb.dtype == matmul_dtype
                else residual_emb.astype(matmul_dtype))               # one-time cast

    in_b = jnp.dtype(residual.dtype).itemsize
    out_b = jnp.dtype(out_dtype).itemsize
    w_b = jnp.dtype(matmul_dtype).itemsize

    # lane-dense output folding factor
    want_fold = 128 // Dt if (lane_dense_output and Dt < 128 and 128 % Dt == 0) else 1

    # VMEM-aware cap on the time tile (counts double-buffered streams, weights)
    cap = _vmem_cap_bytes()
    w_bytes = (5 * Dt * Dt + Dr * Dt) * w_b + 12 * Dt * 4
    row_bytes = 2 * Dr * in_b + 2 * Dt * out_b + 8 * Dt * 4
    vmem_rows = max(8, (cap - 2 * w_bytes - (4 << 20)) // row_bytes)
    eff_max_tile = max(8, min(int(max_time_tile), int(vmem_rows)))

    def _run(fold, const_bufs):
        T_pad, tile_t, fold = _plan_time_tiling(T, eff_max_tile, fold)
        res_p = residual if T_pad == T else jnp.pad(
            residual, ((0, 0), (0, T_pad - T), (0, 0)))
        grid = (B, T_pad // tile_t)

        if fold > 1:
            out_shape = jax.ShapeDtypeStruct((B, T_pad // fold, fold * Dt), out_dtype)
            out_spec = pl.BlockSpec((1, tile_t // fold, fold * Dt),
                                    lambda b, t: (b, t, 0))
        else:
            out_shape = jax.ShapeDtypeStruct((B, T_pad, Dt), out_dtype)
            out_spec = pl.BlockSpec((1, tile_t, Dt), lambda b, t: (b, t, 0))

        def cspec(shape):
            idx = lambda b, t: (0,) * len(shape)
            if const_bufs == 1:
                try:   # single-buffer constant-index parameter streams
                    return pl.BlockSpec(shape, idx, pipeline_mode=pl.Buffered(1))
                except Exception:
                    pass
            return pl.BlockSpec(shape, idx)

        est = _per_step_vmem(tile_t, Dt, Dr, in_b, out_b, w_b, const_bufs)
        vmem_limit = int(min(cap, max(32 << 20, (est * 5) // 4 + (2 << 20))))

        flops = int(2 * B * T_pad * (Dr * Dt + 5 * Dt * Dt))
        trans = int(B * T_pad * (2 * Dt + 4))
        bytes_acc = int(B * 3 * Dt * 4 + B * T_pad * Dr * in_b
                        + B * T_pad * Dt * out_b + w_bytes)

        out = pl.pallas_call(
            make_mixer_kernel(matmul_dtype, fold),
            out_shape=out_shape,
            grid=grid,
            in_specs=[
                pl.BlockSpec((1, 3, Dt), lambda b, t: (b, 0, 0)),        # timbre aux
                pl.BlockSpec((1, tile_t, Dr), lambda b, t: (b, t, 0)),   # residual rows
                cspec(sq_w.shape),                                       # square weights
                cspec(res_w.shape),                                      # residual weight
                cspec(vecs.shape),                                       # bias/gamma/beta
            ],
            out_specs=out_spec,
            compiler_params=pltpu.CompilerParams(
                dimension_semantics=("parallel", "parallel"),
                vmem_limit_bytes=vmem_limit),
            cost_estimate=pl.CostEstimate(flops=flops, transcendentals=trans,
                                          bytes_accessed=bytes_acc),
        )(t_aux, res_p, sq_w, res_w, vecs)

        if fold > 1:
            out = out.reshape(B, T_pad, Dt)      # free: row-major identical
        if T_pad != T:
            out = out[:, :T, :]
        return out

    try:
        return _run(want_fold, const_bufs=1)
    except Exception:
        # fall back to the plain (previously validated) layout on this chip
        return _run(1, const_bufs=2)


# ---------------------- deterministic parameter init ------------------------ #
def init_params(key, timbre_dim, residual_dim, dtype=jnp.float32):
    def linear(k, din, dout):
        k1, k2 = jax.random.split(k)
        lim = 1.0 / np.sqrt(din)
        w = jax.random.uniform(k1, (din, dout), dtype, -lim, lim)
        b = jax.random.uniform(k2, (dout,), dtype, -lim, lim)
        return [w, b]

    def stack(k, din, dout):
        return linear(k, din, dout) + [jnp.ones((dout,), dtype),
                                       jnp.zeros((dout,), dtype)]

    keys = jax.random.split(key, 7)
    params = []
    params += stack(keys[0], timbre_dim, timbre_dim)          # timbre_LR
    params += stack(keys[1], residual_dim, timbre_dim)        # res_LR
    params += stack(keys[2], 2 * timbre_dim, timbre_dim)      # tanh_LRL stack
    params += linear(keys[3], timbre_dim, timbre_dim)         # tanh_LRL final
    params += stack(keys[4], 2 * timbre_dim, timbre_dim)      # sigmoid_LRL stack
    params += linear(keys[5], timbre_dim, timbre_dim)         # sigmoid_LRL final
    params += stack(keys[6], timbre_dim, timbre_dim)          # output_LR
    return params


# ------------------------------ reference ----------------------------------- #
def reference(timbre_emb, residual_emb, params):
    (wt, bt, gt, bet, wr, br, gr, ber,
     w1t, b1t, g1t, be1t, w2t, b2t,
     w1s, b1s, g1s, be1s, w2s, b2s,
     wo, bo, go, beo) = params

    def stack(x, w, b, g, be):
        h = x @ w + b
        mu = h.mean(-1, keepdims=True)
        var = ((h - mu) ** 2).mean(-1, keepdims=True)
        h = (h - mu) / jnp.sqrt(var + LN_EPS) * g + be
        return jnp.where(h > 0, h, LEAKY_SLOPE * h)

    t = stack(timbre_emb, wt, bt, gt, bet)
    r = stack(residual_emb, wr, br, gr, ber)
    tr = jnp.concatenate([jnp.broadcast_to(t, r.shape), r], axis=-1)
    tanh_tr = jnp.tanh(stack(tr, w1t, b1t, g1t, be1t) @ w2t + b2t)
    sig_tr = jax.nn.sigmoid(stack(tr, w1s, b1s, g1s, be1s) @ w2s + b2s)
    r_att = r * tanh_tr * sig_tr
    return stack(t + r_att, wo, bo, go, beo)


# --------------------------------- main ------------------------------------- #
if __name__ == "__main__":
    B, T, TIMBRE_DIM, RES_DIM = 2, 8, 32, 16

    key = jax.random.PRNGKey(0)
    k_t, k_r, k_p = jax.random.split(key, 3)
    timbre_emb = jax.random.normal(k_t, (B, 1, TIMBRE_DIM), jnp.float32)
    residual_emb = jax.random.normal(k_r, (B, T, RES_DIM), jnp.float32)
    params = init_params(k_p, TIMBRE_DIM, RES_DIM)

    # default matmul_dtype=f32 so the strict check below holds on all chips;
    # pass matmul_dtype=jnp.bfloat16 on v6e/v7x for bf16 MXU operands.
    out = timbre_residual_mixer(timbre_emb, residual_emb, params)
    out = jax.block_until_ready(out)

    ref = reference(timbre_emb, residual_emb, params)
    assert out.shape == (B, T, TIMBRE_DIM)
    assert np.allclose(np.asarray(out), np.asarray(ref), atol=1e-4, rtol=1e-4)
    print("KERNEL_OK")
</pallas_src>

<mosaic_0001>
module attributes {stable_mosaic.version = 11 : i64} {
  func.func @mixer_kernel(%arg0: i32, %arg1: i32, %arg2: memref<1x3x32xf32, #tpu.memory_space<vmem>>, %arg3: memref<1x8x16xf32, #tpu.memory_space<vmem>>, %arg4: memref<5x32x32xf32, #tpu.memory_space<vmem>>, %arg5: memref<16x32xf32, #tpu.memory_space<vmem>>, %arg6: memref<12x32xf32, #tpu.memory_space<vmem>>, %arg7: memref<1x2x128xf32, #tpu.memory_space<vmem>>) attributes {dimension_semantics = [#tpu.dimension_semantics<parallel>, #tpu.dimension_semantics<parallel>], iteration_bounds = array<i64: 2, 1>, scalar_prefetch = 0 : i64, scratch_operands = 0 : i64, tpu.core_type = #tpu.core_type<tc>, window_params = [{transform_indices = @transform_0, window_bounds = array<i64: 1, 3, 32>}, {transform_indices = @transform_1, window_bounds = array<i64: 1, 8, 16>}, {pipeline_mode = #tpu.pipeline_mode<synchronous>, transform_indices = @transform_2, window_bounds = array<i64: 5, 32, 32>}, {pipeline_mode = #tpu.pipeline_mode<synchronous>, transform_indices = @transform_3, window_bounds = array<i64: 16, 32>}, {pipeline_mode = #tpu.pipeline_mode<synchronous>, transform_indices = @transform_4, window_bounds = array<i64: 12, 32>}, {transform_indices = @transform_5, window_bounds = array<i64: 1, 2, 128>}]} {
    %c0 = arith.constant 0 : index
    %c0_0 = arith.constant 0 : index
    %c0_1 = arith.constant 0 : index
    %0 = vector.load %arg2[%c0, %c0_0, %c0_1] : memref<1x3x32xf32, #tpu.memory_space<vmem>>, vector<1x3x32xf32>
    %1 = vector.shape_cast %0 : vector<1x3x32xf32> to vector<3x32xf32>
    %2 = vector.extract_strided_slice %1 {offsets = [0, 0], sizes = [1, 32], strides = [1, 1]} : vector<3x32xf32> to vector<1x32xf32>
    %3 = vector.extract_strided_slice %1 {offsets = [1, 0], sizes = [1, 32], strides = [1, 1]} : vector<3x32xf32> to vector<1x32xf32>
    %4 = vector.extract_strided_slice %1 {offsets = [2, 0], sizes = [1, 32], strides = [1, 1]} : vector<3x32xf32> to vector<1x32xf32>
    %c0_2 = arith.constant 0 : index
    %c0_3 = arith.constant 0 : index
    %c0_4 = arith.constant 0 : index
    %5 = vector.load %arg3[%c0_2, %c0_3, %c0_4] : memref<1x8x16xf32, #tpu.memory_space<vmem>>, vector<1x8x16xf32>
    %6 = vector.shape_cast %5 : vector<1x8x16xf32> to vector<8x16xf32>
    %c0_5 = arith.constant 0 : index
    %c0_6 = arith.constant 0 : index
    %7 = vector.load %arg5[%c0_5, %c0_6] : memref<16x32xf32, #tpu.memory_space<vmem>>, vector<16x32xf32>
    %cst = arith.constant dense<0.000000e+00> : vector<8x32xf32>
    %8 = tpu.matmul %6, %7, %cst {dimension_numbers = #tpu.dot_dimension_numbers<[1], [0], [0], [1], [0, 0, 1, 1], [], []>} : vector<8x16xf32>, vector<16x32xf32>, vector<8x32xf32> -> vector<8x32xf32>
    %c0_7 = arith.constant 0 : index
    %c0_8 = arith.constant 0 : index
    %9 = vector.load %arg6[%c0_7, %c0_8] : memref<12x32xf32, #tpu.memory_space<vmem>>, vector<1x32xf32>
    %10 = vector.broadcast %9 : vector<1x32xf32> to vector<8x32xf32>
    %11 = arith.addf %8, %10 : vector<8x32xf32>
    %cst_9 = arith.constant dense<0.000000e+00> : vector<8xf32>
    %12 = vector.multi_reduction <add>, %11, %cst_9 [1] : vector<8x32xf32> to vector<8xf32>
    %13 = vector.shape_cast %12 : vector<8xf32> to vector<8x1xf32>
    %cst_10 = arith.constant 3.200000e+01 : f32
    %14 = vector.broadcast %cst_10 : f32 to vector<8x1xf32>
    %15 = arith.divf %13, %14 : vector<8x1xf32>
    %16 = vector.broadcast %15 : vector<8x1xf32> to vector<8x32xf32>
    %17 = arith.subf %11, %16 : vector<8x32xf32>
    %18 = arith.mulf %17, %17 : vector<8x32xf32>
    %cst_11 = arith.constant dense<0.000000e+00> : vector<8xf32>
    %19 = vector.multi_reduction <add>, %18, %cst_11 [1] : vector<8x32xf32> to vector<8xf32>
    %20 = vector.shape_cast %19 : vector<8xf32> to vector<8x1xf32>
    %cst_12 = arith.constant 3.200000e+01 : f32
    %21 = vector.broadcast %cst_12 : f32 to vector<8x1xf32>
    %22 = arith.divf %20, %21 : vector<8x1xf32>
    %23 = vector.broadcast %15 : vector<8x1xf32> to vector<8x32xf32>
    %24 = arith.subf %11, %23 : vector<8x32xf32>
    %cst_13 = arith.constant 9.99999974E-6 : f32
    %25 = vector.broadcast %cst_13 : f32 to vector<8x1xf32>
    %26 = arith.addf %22, %25 : vector<8x1xf32>
    %27 = math.rsqrt %26 : vector<8x1xf32>
    %28 = vector.broadcast %27 : vector<8x1xf32> to vector<8x32xf32>
    %29 = arith.mulf %24, %28 : vector<8x32xf32>
    %c1 = arith.constant 1 : index
    %c0_14 = arith.constant 0 : index
    %30 = vector.load %arg6[%c1, %c0_14] : memref<12x32xf32, #tpu.memory_space<vmem>>, vector<1x32xf32>
    %31 = vector.broadcast %30 : vector<1x32xf32> to vector<8x32xf32>
    %32 = arith.mulf %29, %31 : vector<8x32xf32>
    %c2 = arith.constant 2 : index
    %c0_15 = arith.constant 0 : index
    %33 = vector.load %arg6[%c2, %c0_15] : memref<12x32xf32, #tpu.memory_space<vmem>>, vector<1x32xf32>
    %34 = vector.broadcast %33 : vector<1x32xf32> to vector<8x32xf32>
    %35 = arith.addf %32, %34 : vector<8x32xf32>
    %cst_16 = arith.constant 0.000000e+00 : f32
    %36 = vector.broadcast %cst_16 : f32 to vector<8x32xf32>
    %37 = arith.cmpf ogt, %35, %36 : vector<8x32xf32>
    %cst_17 = arith.constant 0.00999999977 : f32
    %38 = vector.broadcast %cst_17 : f32 to vector<8x32xf32>
    %39 = arith.mulf %38, %35 : vector<8x32xf32>
    %40 = arith.select %37, %35, %39 : vector<8x32xi1>, vector<8x32xf32>
    %c0_18 = arith.constant 0 : index
    %c0_19 = arith.constant 0 : index
    %c0_20 = arith.constant 0 : index
    %41 = vector.load %arg4[%c0_18, %c0_19, %c0_20] : memref<5x32x32xf32, #tpu.memory_space<vmem>>, vector<1x32x32xf32>
    %42 = vector.shape_cast %41 : vector<1x32x32xf32> to vector<32x32xf32>
    %cst_21 = arith.constant dense<0.000000e+00> : vector<8x32xf32>
    %43 = tpu.matmul %40, %42, %cst_21 {dimension_numbers = #tpu.dot_dimension_numbers<[1], [0], [0], [1], [0, 0, 1, 1], [], []>} : vector<8x32xf32>, vector<32x32xf32>, vector<8x32xf32> -> vector<8x32xf32>
    %44 = vector.broadcast %3 : vector<1x32xf32> to vector<8x32xf32>
    %45 = arith.addf %44, %43 : vector<8x32xf32>
    %cst_22 = arith.constant dense<0.000000e+00> : vector<8xf32>
    %46 = vector.multi_reduction <add>, %45, %cst_22 [1] : vector<8x32xf32> to vector<8xf32>
    %47 = vector.shape_cast %46 : vector<8xf32> to vector<8x1xf32>
    %cst_23 = arith.constant 3.200000e+01 : f32
    %48 = vector.broadcast %cst_23 : f32 to vector<8x1xf32>
    %49 = arith.divf %47, %48 : vector<8x1xf32>
    %50 = vector.broadcast %49 : vector<8x1xf32> to vector<8x32xf32>
    %51 = arith.subf %45, %50 : vector<8x32xf32>
    %52 = arith.mulf %51, %51 : vector<8x32xf32>
    %cst_24 = arith.constant dense<0.000000e+00> : vector<8xf32>
    %53 = vector.multi_reduction <add>, %52, %cst_24 [1] : vector<8x32xf32> to vector<8xf32>
    %54 = vector.shape_cast %53 : vector<8xf32> to vector<8x1xf32>
    %cst_25 = arith.constant 3.200000e+01 : f32
    %55 = vector.broadcast %cst_25 : f32 to vector<8x1xf32>
    %56 = arith.divf %54, %55 : vector<8x1xf32>
    %57 = vector.broadcast %49 : vector<8x1xf32> to vector<8x32xf32>
    %58 = arith.subf %45, %57 : vector<8x32xf32>
    %cst_26 = arith.constant 9.99999974E-6 : f32
    %59 = vector.broadcast %cst_26 : f32 to vector<8x1xf32>
    %60 = arith.addf %56, %59 : vector<8x1xf32>
    %61 = math.rsqrt %60 : vector<8x1xf32>
    %62 = vector.broadcast %61 : vector<8x1xf32> to vector<8x32xf32>
    %63 = arith.mulf %58, %62 : vector<8x32xf32>
    %c3 = arith.constant 3 : index
    %c0_27 = arith.constant 0 : index
    %64 = vector.load %arg6[%c3, %c0_27] : memref<12x32xf32, #tpu.memory_space<vmem>>, vector<1x32xf32>
    %65 = vector.broadcast %64 : vector<1x32xf32> to vector<8x32xf32>
    %66 = arith.mulf %63, %65 : vector<8x32xf32>
    %c4 = arith.constant 4 : index
    %c0_28 = arith.constant 0 : index
    %67 = vector.load %arg6[%c4, %c0_28] : memref<12x32xf32, #tpu.memory_space<vmem>>, vector<1x32xf32>
    %68 = vector.broadcast %67 : vector<1x32xf32> to vector<8x32xf32>
    %69 = arith.addf %66, %68 : vector<8x32xf32>
    %cst_29 = arith.constant 0.000000e+00 : f32
    %70 = vector.broadcast %cst_29 : f32 to vector<8x32xf32>
    %71 = arith.cmpf ogt, %69, %70 : vector<8x32xf32>
    %cst_30 = arith.constant 0.00999999977 : f32
    %72 = vector.broadcast %cst_30 : f32 to vector<8x32xf32>
    %73 = arith.mulf %72, %69 : vector<8x32xf32>
    %74 = arith.select %71, %69, %73 : vector<8x32xi1>, vector<8x32xf32>
    %c1_31 = arith.constant 1 : index
    %c0_32 = arith.constant 0 : index
    %c0_33 = arith.constant 0 : index
    %75 = vector.load %arg4[%c1_31, %c0_32, %c0_33] : memref<5x32x32xf32, #tpu.memory_space<vmem>>, vector<1x32x32xf32>
    %76 = vector.shape_cast %75 : vector<1x32x32xf32> to vector<32x32xf32>
    %cst_34 = arith.constant dense<0.000000e+00> : vector<8x32xf32>
    %77 = tpu.matmul %40, %76, %cst_34 {dimension_numbers = #tpu.dot_dimension_numbers<[1], [0], [0], [1], [0, 0, 1, 1], [], []>} : vector<8x32xf32>, vector<32x32xf32>, vector<8x32xf32> -> vector<8x32xf32>
    %78 = vector.broadcast %4 : vector<1x32xf32> to vector<8x32xf32>
    %79 = arith.addf %78, %77 : vector<8x32xf32>
    %cst_35 = arith.constant dense<0.000000e+00> : vector<8xf32>
    %80 = vector.multi_reduction <add>, %79, %cst_35 [1] : vector<8x32xf32> to vector<8xf32>
    %81 = vector.shape_cast %80 : vector<8xf32> to vector<8x1xf32>
    %cst_36 = arith.constant 3.200000e+01 : f32
    %82 = vector.broadcast %cst_36 : f32 to vector<8x1xf32>
    %83 = arith.divf %81, %82 : vector<8x1xf32>
    %84 = vector.broadcast %83 : vector<8x1xf32> to vector<8x32xf32>
    %85 = arith.subf %79, %84 : vector<8x32xf32>
    %86 = arith.mulf %85, %85 : vector<8x32xf32>
    %cst_37 = arith.constant dense<0.000000e+00> : vector<8xf32>
    %87 = vector.multi_reduction <add>, %86, %cst_37 [1] : vector<8x32xf32> to vector<8xf32>
    %88 = vector.shape_cast %87 : vector<8xf32> to vector<8x1xf32>
    %cst_38 = arith.constant 3.200000e+01 : f32
    %89 = vector.broadcast %cst_38 : f32 to vector<8x1xf32>
    %90 = arith.divf %88, %89 : vector<8x1xf32>
    %91 = vector.broadcast %83 : vector<8x1xf32> to vector<8x32xf32>
    %92 = arith.subf %79, %91 : vector<8x32xf32>
    %cst_39 = arith.constant 9.99999974E-6 : f32
    %93 = vector.broadcast %cst_39 : f32 to vector<8x1xf32>
    %94 = arith.addf %90, %93 : vector<8x1xf32>
    %95 = math.rsqrt %94 : vector<8x1xf32>
    %96 = vector.broadcast %95 : vector<8x1xf32> to vector<8x32xf32>
    %97 = arith.mulf %92, %96 : vector<8x32xf32>
    %c5 = arith.constant 5 : index
    %c0_40 = arith.constant 0 : index
    %98 = vector.load %arg6[%c5, %c0_40] : memref<12x32xf32, #tpu.memory_space<vmem>>, vector<1x32xf32>
    %99 = vector.broadcast %98 : vector<1x32xf32> to vector<8x32xf32>
    %100 = arith.mulf %97, %99 : vector<8x32xf32>
    %c6 = arith.constant 6 : index
    %c0_41 = arith.constant 0 : index
    %101 = vector.load %arg6[%c6, %c0_41] : memref<12x32xf32, #tpu.memory_space<vmem>>, vector<1x32xf32>
    %102 = vector.broadcast %101 : vector<1x32xf32> to vector<8x32xf32>
    %103 = arith.addf %100, %102 : vector<8x32xf32>
    %cst_42 = arith.constant 0.000000e+00 : f32
    %104 = vector.broadcast %cst_42 : f32 to vector<8x32xf32>
    %105 = arith.cmpf ogt, %103, %104 : vector<8x32xf32>
    %cst_43 = arith.constant 0.00999999977 : f32
    %106 = vector.broadcast %cst_43 : f32 to vector<8x32xf32>
    %107 = arith.mulf %106, %103 : vector<8x32xf32>
    %108 = arith.select %105, %103, %107 : vector<8x32xi1>, vector<8x32xf32>
    %c2_44 = arith.constant 2 : index
    %c0_45 = arith.constant 0 : index
    %c0_46 = arith.constant 0 : index
    %109 = vector.load %arg4[%c2_44, %c0_45, %c0_46] : memref<5x32x32xf32, #tpu.memory_space<vmem>>, vector<1x32x32xf32>
    %110 = vector.shape_cast %109 : vector<1x32x32xf32> to vector<32x32xf32>
    %cst_47 = arith.constant dense<0.000000e+00> : vector<8x32xf32>
    %111 = tpu.matmul %74, %110, %cst_47 {dimension_numbers = #tpu.dot_dimension_numbers<[1], [0], [0], [1], [0, 0, 1, 1], [], []>} : vector<8x32xf32>, vector<32x32xf32>, vector<8x32xf32> -> vector<8x32xf32>
    %c7 = arith.constant 7 : index
    %c0_48 = arith.constant 0 : index
    %112 = vector.load %arg6[%c7, %c0_48] : memref<12x32xf32, #tpu.memory_space<vmem>>, vector<1x32xf32>
    %113 = vector.broadcast %112 : vector<1x32xf32> to vector<8x32xf32>
    %114 = arith.addf %111, %113 : vector<8x32xf32>
    %115 = math.tanh %114 : vector<8x32xf32>
    %c3_49 = arith.constant 3 : index
    %c0_50 = arith.constant 0 : index
    %c0_51 = arith.constant 0 : index
    %116 = vector.load %arg4[%c3_49, %c0_50, %c0_51] : memref<5x32x32xf32, #tpu.memory_space<vmem>>, vector<1x32x32xf32>
    %117 = vector.shape_cast %116 : vector<1x32x32xf32> to vector<32x32xf32>
    %cst_52 = arith.constant dense<0.000000e+00> : vector<8x32xf32>
    %118 = tpu.matmul %108, %117, %cst_52 {dimension_numbers = #tpu.dot_dimension_numbers<[1], [0], [0], [1], [0, 0, 1, 1], [], []>} : vector<8x32xf32>, vector<32x32xf32>, vector<8x32xf32> -> vector<8x32xf32>
    %c8 = arith.constant 8 : index
    %c0_53 = arith.constant 0 : index
    %119 = vector.load %arg6[%c8, %c0_53] : memref<12x32xf32, #tpu.memory_space<vmem>>, vector<1x32xf32>
    %120 = vector.broadcast %119 : vector<1x32xf32> to vector<8x32xf32>
    %121 = arith.addf %118, %120 : vector<8x32xf32>
    %122 = arith.negf %121 : vector<8x32xf32>
    %123 = math.exp %122 : vector<8x32xf32>
    %cst_54 = arith.constant 1.000000e+00 : f32
    %124 = vector.broadcast %cst_54 : f32 to vector<8x32xf32>
    %125 = arith.addf %124, %123 : vector<8x32xf32>
    %126 = arith.divf %124, %125 : vector<8x32xf32>
    %127 = arith.mulf %40, %115 : vector<8x32xf32>
    %128 = arith.mulf %127, %126 : vector<8x32xf32>
    %129 = vector.broadcast %2 : vector<1x32xf32> to vector<8x32xf32>
    %130 = arith.addf %129, %128 : vector<8x32xf32>
    %c4_55 = arith.constant 4 : index
    %c0_56 = arith.constant 0 : index
    %c0_57 = arith.constant 0 : index
    %131 = vector.load %arg4[%c4_55, %c0_56, %c0_57] : memref<5x32x32xf32, #tpu.memory_space<vmem>>, vector<1x32x32xf32>
    %132 = vector.shape_cast %131 : vector<1x32x32xf32> to vector<32x32xf32>
    %cst_58 = arith.constant dense<0.000000e+00> : vector<8x32xf32>
    %133 = tpu.matmul %130, %132, %cst_58 {dimension_numbers = #tpu.dot_dimension_numbers<[1], [0], [0], [1], [0, 0, 1, 1], [], []>} : vector<8x32xf32>, vector<32x32xf32>, vector<8x32xf32> -> vector<8x32xf32>
    %c9 = arith.constant 9 : index
    %c0_59 = arith.constant 0 : index
    %134 = vector.load %arg6[%c9, %c0_59] : memref<12x32xf32, #tpu.memory_space<vmem>>, vector<1x32xf32>
    %135 = vector.broadcast %134 : vector<1x32xf32> to vector<8x32xf32>
    %136 = arith.addf %133, %135 : vector<8x32xf32>
    %cst_60 = arith.constant dense<0.000000e+00> : vector<8xf32>
    %137 = vector.multi_reduction <add>, %136, %cst_60 [1] : vector<8x32xf32> to vector<8xf32>
    %138 = vector.shape_cast %137 : vector<8xf32> to vector<8x1xf32>
    %cst_61 = arith.constant 3.200000e+01 : f32
    %139 = vector.broadcast %cst_61 : f32 to vector<8x1xf32>
    %140 = arith.divf %138, %139 : vector<8x1xf32>
    %141 = vector.broadcast %140 : vector<8x1xf32> to vector<8x32xf32>
    %142 = arith.subf %136, %141 : vector<8x32xf32>
    %143 = arith.mulf %142, %142 : vector<8x32xf32>
    %cst_62 = arith.constant dense<0.000000e+00> : vector<8xf32>
    %144 = vector.multi_reduction <add>, %143, %cst_62 [1] : vector<8x32xf32> to vector<8xf32>
    %145 = vector.shape_cast %144 : vector<8xf32> to vector<8x1xf32>
    %cst_63 = arith.constant 3.200000e+01 : f32
    %146 = vector.broadcast %cst_63 : f32 to vector<8x1xf32>
    %147 = arith.divf %145, %146 : vector<8x1xf32>
    %148 = vector.broadcast %140 : vector<8x1xf32> to vector<8x32xf32>
    %149 = arith.subf %136, %148 : vector<8x32xf32>
    %cst_64 = arith.constant 9.99999974E-6 : f32
    %150 = vector.broadcast %cst_64 : f32 to vector<8x1xf32>
    %151 = arith.addf %147, %150 : vector<8x1xf32>
    %152 = math.rsqrt %151 : vector<8x1xf32>
    %153 = vector.broadcast %152 : vector<8x1xf32> to vector<8x32xf32>
    %154 = arith.mulf %149, %153 : vector<8x32xf32>
    %c10 = arith.constant 10 : index
    %c0_65 = arith.constant 0 : index
    %155 = vector.load %arg6[%c10, %c0_65] : memref<12x32xf32, #tpu.memory_space<vmem>>, vector<1x32xf32>
    %156 = vector.broadcast %155 : vector<1x32xf32> to vector<8x32xf32>
    %157 = arith.mulf %154, %156 : vector<8x32xf32>
    %c11 = arith.constant 11 : index
    %c0_66 = arith.constant 0 : index
    %158 = vector.load %arg6[%c11, %c0_66] : memref<12x32xf32, #tpu.memory_space<vmem>>, vector<1x32xf32>
    %159 = vector.broadcast %158 : vector<1x32xf32> to vector<8x32xf32>
    %160 = arith.addf %157, %159 : vector<8x32xf32>
    %cst_67 = arith.constant 0.000000e+00 : f32
    %161 = vector.broadcast %cst_67 : f32 to vector<8x32xf32>
    %162 = arith.cmpf ogt, %160, %161 : vector<8x32xf32>
    %cst_68 = arith.constant 0.00999999977 : f32
    %163 = vector.broadcast %cst_68 : f32 to vector<8x32xf32>
    %164 = arith.mulf %163, %160 : vector<8x32xf32>
    %165 = arith.select %162, %160, %164 : vector<8x32xi1>, vector<8x32xf32>
    %166 = vector.shape_cast %165 : vector<8x32xf32> to vector<2x128xf32>
    %c0_69 = arith.constant 0 : index
    %c0_70 = arith.constant 0 : index
    %c0_71 = arith.constant 0 : index
    %167 = vector.load %arg7[%c0_69, %c0_70, %c0_71] : memref<1x2x128xf32, #tpu.memory_space<vmem>>, vector<1x2x128xf32>
    %168 = vector.shape_cast %167 : vector<1x2x128xf32> to vector<2x128xf32>
    %169 = vector.shape_cast %166 : vector<2x128xf32> to vector<1x2x128xf32>
    tpu.vector_store %arg7[%c0_69, %c0_70, %c0_71], %169 {strides = array<i32>} : memref<1x2x128xf32, #tpu.memory_space<vmem>>, vector<1x2x128xf32>,
    return
  }
  func.func @transform_0(%arg0: i32, %arg1: i32) -> (i32, i32, i32) {
    %c0_i32 = arith.constant 0 : i32
    %c0_i32_0 = arith.constant 0 : i32
    %c0_i32_1 = arith.constant 0 : i32
    return %arg0, %c0_i32, %c0_i32_0 : i32, i32, i32
  }
  func.func @transform_1(%arg0: i32, %arg1: i32) -> (i32, i32, i32) {
    %c0_i32 = arith.constant 0 : i32
    %c0_i32_0 = arith.constant 0 : i32
    return %arg0, %arg1, %c0_i32 : i32, i32, i32
  }
  func.func @transform_2(%arg0: i32, %arg1: i32) -> (i32, i32, i32) {
    %c0_i32 = arith.constant 0 : i32
    %c0_i32_0 = arith.constant 0 : i32
    %c0_i32_1 = arith.constant 0 : i32
    %c0_i32_2 = arith.constant 0 : i32
    return %c0_i32, %c0_i32_0, %c0_i32_1 : i32, i32, i32
  }
  func.func @transform_3(%arg0: i32, %arg1: i32) -> (i32, i32) {
    %c0_i32 = arith.constant 0 : i32
    %c0_i32_0 = arith.constant 0 : i32
    %c0_i32_1 = arith.constant 0 : i32
    return %c0_i32, %c0_i32_0 : i32, i32
  }
  func.func @transform_4(%arg0: i32, %arg1: i32) -> (i32, i32) {
    %c0_i32 = arith.constant 0 : i32
    %c0_i32_0 = arith.constant 0 : i32
    %c0_i32_1 = arith.constant 0 : i32
    return %c0_i32, %c0_i32_0 : i32, i32
  }
  func.func @transform_5(%arg0: i32, %arg1: i32) -> (i32, i32, i32) {
    %c0_i32 = arith.constant 0 : i32
    %c0_i32_0 = arith.constant 0 : i32
    return %arg0, %arg1, %c0_i32 : i32, i32, i32
  }
}

module attributes {stable_mosaic.version = 11 : i64} {
  func.func @mixer_kernel(%arg0: i32, %arg1: i32, %arg2: memref<1x3x32xf32, #tpu.memory_space<vmem>>, %arg3: memref<1x8x16xf32, #tpu.memory_space<vmem>>, %arg4: memref<5x32x32xf32, #tpu.memory_space<vmem>>, %arg5: memref<16x32xf32, #tpu.memory_space<vmem>>, %arg6: memref<12x32xf32, #tpu.memory_space<vmem>>, %arg7: memref<1x8x32xf32, #tpu.memory_space<vmem>>) attributes {dimension_semantics = [#tpu.dimension_semantics<parallel>, #tpu.dimension_semantics<parallel>], iteration_bounds = array<i64: 2, 1>, scalar_prefetch = 0 : i64, scratch_operands = 0 : i64, tpu.core_type = #tpu.core_type<tc>, window_params = [{transform_indices = @transform_0, window_bounds = array<i64: 1, 3, 32>}, {transform_indices = @transform_1, window_bounds = array<i64: 1, 8, 16>}, {pipeline_mode = #tpu.pipeline_mode<synchronous>, transform_indices = @transform_2, window_bounds = array<i64: 5, 32, 32>}, {pipeline_mode = #tpu.pipeline_mode<synchronous>, transform_indices = @transform_3, window_bounds = array<i64: 16, 32>}, {pipeline_mode = #tpu.pipeline_mode<synchronous>, transform_indices = @transform_4, window_bounds = array<i64: 12, 32>}, {transform_indices = @transform_5, window_bounds = array<i64: 1, 8, 32>}]} {
    %c0 = arith.constant 0 : index
    %c0_0 = arith.constant 0 : index
    %c0_1 = arith.constant 0 : index
    %0 = vector.load %arg2[%c0, %c0_0, %c0_1] : memref<1x3x32xf32, #tpu.memory_space<vmem>>, vector<1x3x32xf32>
    %1 = vector.shape_cast %0 : vector<1x3x32xf32> to vector<3x32xf32>
    %2 = vector.extract_strided_slice %1 {offsets = [0, 0], sizes = [1, 32], strides = [1, 1]} : vector<3x32xf32> to vector<1x32xf32>
    %3 = vector.extract_strided_slice %1 {offsets = [1, 0], sizes = [1, 32], strides = [1, 1]} : vector<3x32xf32> to vector<1x32xf32>
    %4 = vector.extract_strided_slice %1 {offsets = [2, 0], sizes = [1, 32], strides = [1, 1]} : vector<3x32xf32> to vector<1x32xf32>
    %c0_2 = arith.constant 0 : index
    %c0_3 = arith.constant 0 : index
    %c0_4 = arith.constant 0 : index
    %5 = vector.load %arg3[%c0_2, %c0_3, %c0_4] : memref<1x8x16xf32, #tpu.memory_space<vmem>>, vector<1x8x16xf32>
    %6 = vector.shape_cast %5 : vector<1x8x16xf32> to vector<8x16xf32>
    %c0_5 = arith.constant 0 : index
    %c0_6 = arith.constant 0 : index
    %7 = vector.load %arg5[%c0_5, %c0_6] : memref<16x32xf32, #tpu.memory_space<vmem>>, vector<16x32xf32>
    %cst = arith.constant dense<0.000000e+00> : vector<8x32xf32>
    %8 = tpu.matmul %6, %7, %cst {dimension_numbers = #tpu.dot_dimension_numbers<[1], [0], [0], [1], [0, 0, 1, 1], [], []>} : vector<8x16xf32>, vector<16x32xf32>, vector<8x32xf32> -> vector<8x32xf32>
    %c0_7 = arith.constant 0 : index
    %c0_8 = arith.constant 0 : index
    %9 = vector.load %arg6[%c0_7, %c0_8] : memref<12x32xf32, #tpu.memory_space<vmem>>, vector<1x32xf32>
    %10 = vector.broadcast %9 : vector<1x32xf32> to vector<8x32xf32>
    %11 = arith.addf %8, %10 : vector<8x32xf32>
    %cst_9 = arith.constant dense<0.000000e+00> : vector<8xf32>
    %12 = vector.multi_reduction <add>, %11, %cst_9 [1] : vector<8x32xf32> to vector<8xf32>
    %13 = vector.shape_cast %12 : vector<8xf32> to vector<8x1xf32>
    %cst_10 = arith.constant 3.200000e+01 : f32
    %14 = vector.broadcast %cst_10 : f32 to vector<8x1xf32>
    %15 = arith.divf %13, %14 : vector<8x1xf32>
    %16 = vector.broadcast %15 : vector<8x1xf32> to vector<8x32xf32>
    %17 = arith.subf %11, %16 : vector<8x32xf32>
    %18 = arith.mulf %17, %17 : vector<8x32xf32>
    %cst_11 = arith.constant dense<0.000000e+00> : vector<8xf32>
    %19 = vector.multi_reduction <add>, %18, %cst_11 [1] : vector<8x32xf32> to vector<8xf32>
    %20 = vector.shape_cast %19 : vector<8xf32> to vector<8x1xf32>
    %cst_12 = arith.constant 3.200000e+01 : f32
    %21 = vector.broadcast %cst_12 : f32 to vector<8x1xf32>
    %22 = arith.divf %20, %21 : vector<8x1xf32>
    %23 = vector.broadcast %15 : vector<8x1xf32> to vector<8x32xf32>
    %24 = arith.subf %11, %23 : vector<8x32xf32>
    %cst_13 = arith.constant 9.99999974E-6 : f32
    %25 = vector.broadcast %cst_13 : f32 to vector<8x1xf32>
    %26 = arith.addf %22, %25 : vector<8x1xf32>
    %27 = math.rsqrt %26 : vector<8x1xf32>
    %28 = vector.broadcast %27 : vector<8x1xf32> to vector<8x32xf32>
    %29 = arith.mulf %24, %28 : vector<8x32xf32>
    %c1 = arith.constant 1 : index
    %c0_14 = arith.constant 0 : index
    %30 = vector.load %arg6[%c1, %c0_14] : memref<12x32xf32, #tpu.memory_space<vmem>>, vector<1x32xf32>
    %31 = vector.broadcast %30 : vector<1x32xf32> to vector<8x32xf32>
    %32 = arith.mulf %29, %31 : vector<8x32xf32>
    %c2 = arith.constant 2 : index
    %c0_15 = arith.constant 0 : index
    %33 = vector.load %arg6[%c2, %c0_15] : memref<12x32xf32, #tpu.memory_space<vmem>>, vector<1x32xf32>
    %34 = vector.broadcast %33 : vector<1x32xf32> to vector<8x32xf32>
    %35 = arith.addf %32, %34 : vector<8x32xf32>
    %cst_16 = arith.constant 0.000000e+00 : f32
    %36 = vector.broadcast %cst_16 : f32 to vector<8x32xf32>
    %37 = arith.cmpf ogt, %35, %36 : vector<8x32xf32>
    %cst_17 = arith.constant 0.00999999977 : f32
    %38 = vector.broadcast %cst_17 : f32 to vector<8x32xf32>
    %39 = arith.mulf %38, %35 : vector<8x32xf32>
    %40 = arith.select %37, %35, %39 : vector<8x32xi1>, vector<8x32xf32>
    %c0_18 = arith.constant 0 : index
    %c0_19 = arith.constant 0 : index
    %c0_20 = arith.constant 0 : index
    %41 = vector.load %arg4[%c0_18, %c0_19, %c0_20] : memref<5x32x32xf32, #tpu.memory_space<vmem>>, vector<1x32x32xf32>
    %42 = vector.shape_cast %41 : vector<1x32x32xf32> to vector<32x32xf32>
    %cst_21 = arith.constant dense<0.000000e+00> : vector<8x32xf32>
    %43 = tpu.matmul %40, %42, %cst_21 {dimension_numbers = #tpu.dot_dimension_numbers<[1], [0], [0], [1], [0, 0, 1, 1], [], []>} : vector<8x32xf32>, vector<32x32xf32>, vector<8x32xf32> -> vector<8x32xf32>
    %44 = vector.broadcast %3 : vector<1x32xf32> to vector<8x32xf32>
    %45 = arith.addf %44, %43 : vector<8x32xf32>
    %cst_22 = arith.constant dense<0.000000e+00> : vector<8xf32>
    %46 = vector.multi_reduction <add>, %45, %cst_22 [1] : vector<8x32xf32> to vector<8xf32>
    %47 = vector.shape_cast %46 : vector<8xf32> to vector<8x1xf32>
    %cst_23 = arith.constant 3.200000e+01 : f32
    %48 = vector.broadcast %cst_23 : f32 to vector<8x1xf32>
    %49 = arith.divf %47, %48 : vector<8x1xf32>
    %50 = vector.broadcast %49 : vector<8x1xf32> to vector<8x32xf32>
    %51 = arith.subf %45, %50 : vector<8x32xf32>
    %52 = arith.mulf %51, %51 : vector<8x32xf32>
    %cst_24 = arith.constant dense<0.000000e+00> : vector<8xf32>
    %53 = vector.multi_reduction <add>, %52, %cst_24 [1] : vector<8x32xf32> to vector<8xf32>
    %54 = vector.shape_cast %53 : vector<8xf32> to vector<8x1xf32>
    %cst_25 = arith.constant 3.200000e+01 : f32
    %55 = vector.broadcast %cst_25 : f32 to vector<8x1xf32>
    %56 = arith.divf %54, %55 : vector<8x1xf32>
    %57 = vector.broadcast %49 : vector<8x1xf32> to vector<8x32xf32>
    %58 = arith.subf %45, %57 : vector<8x32xf32>
    %cst_26 = arith.constant 9.99999974E-6 : f32
    %59 = vector.broadcast %cst_26 : f32 to vector<8x1xf32>
    %60 = arith.addf %56, %59 : vector<8x1xf32>
    %61 = math.rsqrt %60 : vector<8x1xf32>
    %62 = vector.broadcast %61 : vector<8x1xf32> to vector<8x32xf32>
    %63 = arith.mulf %58, %62 : vector<8x32xf32>
    %c3 = arith.constant 3 : index
    %c0_27 = arith.constant 0 : index
    %64 = vector.load %arg6[%c3, %c0_27] : memref<12x32xf32, #tpu.memory_space<vmem>>, vector<1x32xf32>
    %65 = vector.broadcast %64 : vector<1x32xf32> to vector<8x32xf32>
    %66 = arith.mulf %63, %65 : vector<8x32xf32>
    %c4 = arith.constant 4 : index
    %c0_28 = arith.constant 0 : index
    %67 = vector.load %arg6[%c4, %c0_28] : memref<12x32xf32, #tpu.memory_space<vmem>>, vector<1x32xf32>
    %68 = vector.broadcast %67 : vector<1x32xf32> to vector<8x32xf32>
    %69 = arith.addf %66, %68 : vector<8x32xf32>
    %cst_29 = arith.constant 0.000000e+00 : f32
    %70 = vector.broadcast %cst_29 : f32 to vector<8x32xf32>
    %71 = arith.cmpf ogt, %69, %70 : vector<8x32xf32>
    %cst_30 = arith.constant 0.00999999977 : f32
    %72 = vector.broadcast %cst_30 : f32 to vector<8x32xf32>
    %73 = arith.mulf %72, %69 : vector<8x32xf32>
    %74 = arith.select %71, %69, %73 : vector<8x32xi1>, vector<8x32xf32>
    %c1_31 = arith.constant 1 : index
    %c0_32 = arith.constant 0 : index
    %c0_33 = arith.constant 0 : index
    %75 = vector.load %arg4[%c1_31, %c0_32, %c0_33] : memref<5x32x32xf32, #tpu.memory_space<vmem>>, vector<1x32x32xf32>
    %76 = vector.shape_cast %75 : vector<1x32x32xf32> to vector<32x32xf32>
    %cst_34 = arith.constant dense<0.000000e+00> : vector<8x32xf32>
    %77 = tpu.matmul %40, %76, %cst_34 {dimension_numbers = #tpu.dot_dimension_numbers<[1], [0], [0], [1], [0, 0, 1, 1], [], []>} : vector<8x32xf32>, vector<32x32xf32>, vector<8x32xf32> -> vector<8x32xf32>
    %78 = vector.broadcast %4 : vector<1x32xf32> to vector<8x32xf32>
    %79 = arith.addf %78, %77 : vector<8x32xf32>
    %cst_35 = arith.constant dense<0.000000e+00> : vector<8xf32>
    %80 = vector.multi_reduction <add>, %79, %cst_35 [1] : vector<8x32xf32> to vector<8xf32>
    %81 = vector.shape_cast %80 : vector<8xf32> to vector<8x1xf32>
    %cst_36 = arith.constant 3.200000e+01 : f32
    %82 = vector.broadcast %cst_36 : f32 to vector<8x1xf32>
    %83 = arith.divf %81, %82 : vector<8x1xf32>
    %84 = vector.broadcast %83 : vector<8x1xf32> to vector<8x32xf32>
    %85 = arith.subf %79, %84 : vector<8x32xf32>
    %86 = arith.mulf %85, %85 : vector<8x32xf32>
    %cst_37 = arith.constant dense<0.000000e+00> : vector<8xf32>
    %87 = vector.multi_reduction <add>, %86, %cst_37 [1] : vector<8x32xf32> to vector<8xf32>
    %88 = vector.shape_cast %87 : vector<8xf32> to vector<8x1xf32>
    %cst_38 = arith.constant 3.200000e+01 : f32
    %89 = vector.broadcast %cst_38 : f32 to vector<8x1xf32>
    %90 = arith.divf %88, %89 : vector<8x1xf32>
    %91 = vector.broadcast %83 : vector<8x1xf32> to vector<8x32xf32>
    %92 = arith.subf %79, %91 : vector<8x32xf32>
    %cst_39 = arith.constant 9.99999974E-6 : f32
    %93 = vector.broadcast %cst_39 : f32 to vector<8x1xf32>
    %94 = arith.addf %90, %93 : vector<8x1xf32>
    %95 = math.rsqrt %94 : vector<8x1xf32>
    %96 = vector.broadcast %95 : vector<8x1xf32> to vector<8x32xf32>
    %97 = arith.mulf %92, %96 : vector<8x32xf32>
    %c5 = arith.constant 5 : index
    %c0_40 = arith.constant 0 : index
    %98 = vector.load %arg6[%c5, %c0_40] : memref<12x32xf32, #tpu.memory_space<vmem>>, vector<1x32xf32>
    %99 = vector.broadcast %98 : vector<1x32xf32> to vector<8x32xf32>
    %100 = arith.mulf %97, %99 : vector<8x32xf32>
    %c6 = arith.constant 6 : index
    %c0_41 = arith.constant 0 : index
    %101 = vector.load %arg6[%c6, %c0_41] : memref<12x32xf32, #tpu.memory_space<vmem>>, vector<1x32xf32>
    %102 = vector.broadcast %101 : vector<1x32xf32> to vector<8x32xf32>
    %103 = arith.addf %100, %102 : vector<8x32xf32>
    %cst_42 = arith.constant 0.000000e+00 : f32
    %104 = vector.broadcast %cst_42 : f32 to vector<8x32xf32>
    %105 = arith.cmpf ogt, %103, %104 : vector<8x32xf32>
    %cst_43 = arith.constant 0.00999999977 : f32
    %106 = vector.broadcast %cst_43 : f32 to vector<8x32xf32>
    %107 = arith.mulf %106, %103 : vector<8x32xf32>
    %108 = arith.select %105, %103, %107 : vector<8x32xi1>, vector<8x32xf32>
    %c2_44 = arith.constant 2 : index
    %c0_45 = arith.constant 0 : index
    %c0_46 = arith.constant 0 : index
    %109 = vector.load %arg4[%c2_44, %c0_45, %c0_46] : memref<5x32x32xf32, #tpu.memory_space<vmem>>, vector<1x32x32xf32>
    %110 = vector.shape_cast %109 : vector<1x32x32xf32> to vector<32x32xf32>
    %cst_47 = arith.constant dense<0.000000e+00> : vector<8x32xf32>
    %111 = tpu.matmul %74, %110, %cst_47 {dimension_numbers = #tpu.dot_dimension_numbers<[1], [0], [0], [1], [0, 0, 1, 1], [], []>} : vector<8x32xf32>, vector<32x32xf32>, vector<8x32xf32> -> vector<8x32xf32>
    %c7 = arith.constant 7 : index
    %c0_48 = arith.constant 0 : index
    %112 = vector.load %arg6[%c7, %c0_48] : memref<12x32xf32, #tpu.memory_space<vmem>>, vector<1x32xf32>
    %113 = vector.broadcast %112 : vector<1x32xf32> to vector<8x32xf32>
    %114 = arith.addf %111, %113 : vector<8x32xf32>
    %115 = math.tanh %114 : vector<8x32xf32>
    %c3_49 = arith.constant 3 : index
    %c0_50 = arith.constant 0 : index
    %c0_51 = arith.constant 0 : index
    %116 = vector.load %arg4[%c3_49, %c0_50, %c0_51] : memref<5x32x32xf32, #tpu.memory_space<vmem>>, vector<1x32x32xf32>
    %117 = vector.shape_cast %116 : vector<1x32x32xf32> to vector<32x32xf32>
    %cst_52 = arith.constant dense<0.000000e+00> : vector<8x32xf32>
    %118 = tpu.matmul %108, %117, %cst_52 {dimension_numbers = #tpu.dot_dimension_numbers<[1], [0], [0], [1], [0, 0, 1, 1], [], []>} : vector<8x32xf32>, vector<32x32xf32>, vector<8x32xf32> -> vector<8x32xf32>
    %c8 = arith.constant 8 : index
    %c0_53 = arith.constant 0 : index
    %119 = vector.load %arg6[%c8, %c0_53] : memref<12x32xf32, #tpu.memory_space<vmem>>, vector<1x32xf32>
    %120 = vector.broadcast %119 : vector<1x32xf32> to vector<8x32xf32>
    %121 = arith.addf %118, %120 : vector<8x32xf32>
    %122 = arith.negf %121 : vector<8x32xf32>
    %123 = math.exp %122 : vector<8x32xf32>
    %cst_54 = arith.constant 1.000000e+00 : f32
    %124 = vector.broadcast %cst_54 : f32 to vector<8x32xf32>
    %125 = arith.addf %124, %123 : vector<8x32xf32>
    %126 = arith.divf %124, %125 : vector<8x32xf32>
    %127 = arith.mulf %40, %115 : vector<8x32xf32>
    %128 = arith.mulf %127, %126 : vector<8x32xf32>
    %129 = vector.broadcast %2 : vector<1x32xf32> to vector<8x32xf32>
    %130 = arith.addf %129, %128 : vector<8x32xf32>
    %c4_55 = arith.constant 4 : index
    %c0_56 = arith.constant 0 : index
    %c0_57 = arith.constant 0 : index
    %131 = vector.load %arg4[%c4_55, %c0_56, %c0_57] : memref<5x32x32xf32, #tpu.memory_space<vmem>>, vector<1x32x32xf32>
    %132 = vector.shape_cast %131 : vector<1x32x32xf32> to vector<32x32xf32>
    %cst_58 = arith.constant dense<0.000000e+00> : vector<8x32xf32>
    %133 = tpu.matmul %130, %132, %cst_58 {dimension_numbers = #tpu.dot_dimension_numbers<[1], [0], [0], [1], [0, 0, 1, 1], [], []>} : vector<8x32xf32>, vector<32x32xf32>, vector<8x32xf32> -> vector<8x32xf32>
    %c9 = arith.constant 9 : index
    %c0_59 = arith.constant 0 : index
    %134 = vector.load %arg6[%c9, %c0_59] : memref<12x32xf32, #tpu.memory_space<vmem>>, vector<1x32xf32>
    %135 = vector.broadcast %134 : vector<1x32xf32> to vector<8x32xf32>
    %136 = arith.addf %133, %135 : vector<8x32xf32>
    %cst_60 = arith.constant dense<0.000000e+00> : vector<8xf32>
    %137 = vector.multi_reduction <add>, %136, %cst_60 [1] : vector<8x32xf32> to vector<8xf32>
    %138 = vector.shape_cast %137 : vector<8xf32> to vector<8x1xf32>
    %cst_61 = arith.constant 3.200000e+01 : f32
    %139 = vector.broadcast %cst_61 : f32 to vector<8x1xf32>
    %140 = arith.divf %138, %139 : vector<8x1xf32>
    %141 = vector.broadcast %140 : vector<8x1xf32> to vector<8x32xf32>
    %142 = arith.subf %136, %141 : vector<8x32xf32>
    %143 = arith.mulf %142, %142 : vector<8x32xf32>
    %cst_62 = arith.constant dense<0.000000e+00> : vector<8xf32>
    %144 = vector.multi_reduction <add>, %143, %cst_62 [1] : vector<8x32xf32> to vector<8xf32>
    %145 = vector.shape_cast %144 : vector<8xf32> to vector<8x1xf32>
    %cst_63 = arith.constant 3.200000e+01 : f32
    %146 = vector.broadcast %cst_63 : f32 to vector<8x1xf32>
    %147 = arith.divf %145, %146 : vector<8x1xf32>
    %148 = vector.broadcast %140 : vector<8x1xf32> to vector<8x32xf32>
    %149 = arith.subf %136, %148 : vector<8x32xf32>
    %cst_64 = arith.constant 9.99999974E-6 : f32
    %150 = vector.broadcast %cst_64 : f32 to vector<8x1xf32>
    %151 = arith.addf %147, %150 : vector<8x1xf32>
    %152 = math.rsqrt %151 : vector<8x1xf32>
    %153 = vector.broadcast %152 : vector<8x1xf32> to vector<8x32xf32>
    %154 = arith.mulf %149, %153 : vector<8x32xf32>
    %c10 = arith.constant 10 : index
    %c0_65 = arith.constant 0 : index
    %155 = vector.load %arg6[%c10, %c0_65] : memref<12x32xf32, #tpu.memory_space<vmem>>, vector<1x32xf32>
    %156 = vector.broadcast %155 : vector<1x32xf32> to vector<8x32xf32>
    %157 = arith.mulf %154, %156 : vector<8x32xf32>
    %c11 = arith.constant 11 : index
    %c0_66 = arith.constant 0 : index
    %158 = vector.load %arg6[%c11, %c0_66] : memref<12x32xf32, #tpu.memory_space<vmem>>, vector<1x32xf32>
    %159 = vector.broadcast %158 : vector<1x32xf32> to vector<8x32xf32>
    %160 = arith.addf %157, %159 : vector<8x32xf32>
    %cst_67 = arith.constant 0.000000e+00 : f32
    %161 = vector.broadcast %cst_67 : f32 to vector<8x32xf32>
    %162 = arith.cmpf ogt, %160, %161 : vector<8x32xf32>
    %cst_68 = arith.constant 0.00999999977 : f32
    %163 = vector.broadcast %cst_68 : f32 to vector<8x32xf32>
    %164 = arith.mulf %163, %160 : vector<8x32xf32>
    %165 = arith.select %162, %160, %164 : vector<8x32xi1>, vector<8x32xf32>
    %c0_69 = arith.constant 0 : index
    %c0_70 = arith.constant 0 : index
    %c0_71 = arith.constant 0 : index
    %166 = vector.load %arg7[%c0_69, %c0_70, %c0_71] : memref<1x8x32xf32, #tpu.memory_space<vmem>>, vector<1x8x32xf32>
    %167 = vector.shape_cast %166 : vector<1x8x32xf32> to vector<8x32xf32>
    %168 = vector.shape_cast %165 : vector<8x32xf32> to vector<1x8x32xf32>
    tpu.vector_store %arg7[%c0_69, %c0_70, %c0_71], %168 {strides = array<i32>} : memref<1x8x32xf32, #tpu.memory_space<vmem>>, vector<1x8x32xf32>,
    return
  }
  func.func @transform_0(%arg0: i32, %arg1: i32) -> (i32, i32, i32) {
    %c0_i32 = arith.constant 0 : i32
    %c0_i32_0 = arith.constant 0 : i32
    %c0_i32_1 = arith.constant 0 : i32
    return %arg0, %c0_i32, %c0_i32_0 : i32, i32, i32
  }
  func.func @transform_1(%arg0: i32, %arg1: i32) -> (i32, i32, i32) {
    %c0_i32 = arith.constant 0 : i32
    %c0_i32_0 = arith.constant 0 : i32
    return %arg0, %arg1, %c0_i32 : i32, i32, i32
  }
  func.func @transform_2(%arg0: i32, %arg1: i32) -> (i32, i32, i32) {
    %c0_i32 = arith.constant 0 : i32
    %c0_i32_0 = arith.constant 0 : i32
    %c0_i32_1 = arith.constant 0 : i32
    %c0_i32_2 = arith.constant 0 : i32
    return %c0_i32, %c0_i32_0, %c0_i32_1 : i32, i32, i32
  }
  func.func @transform_3(%arg0: i32, %arg1: i32) -> (i32, i32) {
    %c0_i32 = arith.constant 0 : i32
    %c0_i32_0 = arith.constant 0 : i32
    %c0_i32_1 = arith.constant 0 : i32
    return %c0_i32, %c0_i32_0 : i32, i32
  }
  func.func @transform_4(%arg0: i32, %arg1: i32) -> (i32, i32) {
    %c0_i32 = arith.constant 0 : i32
    %c0_i32_0 = arith.constant 0 : i32
    %c0_i32_1 = arith.constant 0 : i32
    return %c0_i32, %c0_i32_0 : i32, i32
  }
  func.func @transform_5(%arg0: i32, %arg1: i32) -> (i32, i32, i32) {
    %c0_i32 = arith.constant 0 : i32
    %c0_i32_0 = arith.constant 0 : i32
    return %arg0, %arg1, %c0_i32 : i32, i32, i32
  }
}

</mosaic_0001>

<llo_original>
// kernel: tpu_custom_call.1
$region0: #{tpu_custom_call.1}
  #allocation0 [shape = 'u32[]', space=smem, size = 0x4, offset = 0x4, fixed_abs, tag = 'smem constant byte address 0x4 - core index']
  #allocation1 [shape = 'u32[72,128]{1,0:T(1,128)}', space=vmem, size = 0x9000, scoped, tag = 'internal scratch']
  %s0 = inlined_call_operand.vmem [shape: f32[2,3,32], index: 0, kind: input, shape index: {}]
  %s1 = inlined_call_operand.hbm [shape: f32[2,8,16], index: 1, kind: input, shape index: {}]
  %s2 = inlined_call_operand.hbm [shape: f32[5,32,32], index: 2, kind: input, shape index: {}]
  %s3 = inlined_call_operand.vmem [shape: f32[16,32], index: 3, kind: input, shape index: {}]
  %s4 = inlined_call_operand.hbm [shape: f32[12,32], index: 4, kind: input, shape index: {}]
  %s5 = inlined_call_operand.hbm [shape: f32[2,8,32], index: 5, kind: output, shape index: {}]
  %s6 = sld [smem:[#allocation0]]
  $region65: #{tpu_custom_call.1} parent=0
    _
  %s8 = ssub.s32 1, %s6
  %s9 = scalar_select 0, %s8, %s6
  $region1: #{tpu_custom_call.1} parent=0
    #allocation2 [shape = 'u8[8192]{0}', space=vmem, size = 0x2000, scoped, tag = 'input window, operand 1']
    #allocation3 [shape = 's32[2]{0}', space=sflag, size = 0x8, scoped, tag = 'scoped memory for tpu_custom_call.1']
    #allocation4 [shape = 's32[2]{0}', space=sflag, size = 0x8, scoped, tag = 'scoped memory for tpu_custom_call.1']
    #allocation5 [shape = 'u8[81920]{0}', space=vmem, size = 0x14000, scoped, tag = 'input window, operand 2, single buffered']
    #allocation6 [shape = 's32[1]{0}', space=sflag, size = 0x4, scoped, tag = 'scoped memory for tpu_custom_call.1']
    #allocation7 [shape = 'u8[8192]{0}', space=vmem, size = 0x2000, scoped, tag = 'input window, operand 4, single buffered']
    #allocation8 [shape = 'u8[8192]{0}', space=vmem, size = 0x2000, scoped, tag = 'output window, operand 0']
    %10 = vsyncpa [#allocation3], 0
    %s11 = scalar_lea.sflag [#allocation3], 1
    %12 = vsyncpa %s11, 0
    %13 = vsyncpa [#allocation6], 0
    %14 = vsyncpa [#allocation4], 0
    %s15 = scalar_lea.sflag [#allocation4], 1
    %16 = vsyncpa %s15, 0
    loop: start=0, step=1, limit=4
    $region2: #{tpu_custom_call.1} parent=1 // loop_pre_header
      _
    $region3: #{tpu_custom_call.1} parent=1 // loop_header
      %s18 = sphi 0, %s22
      %p19 = scmp.ge.s32.totalorder %s18, 4
      %s25 = sphi 0, %s37
      %s26 = sphi 0, %s33
      %s27 = sphi 0, %s25
      %s28 = sphi 0, %s26
      %s29 = sphi 0, %s27
      %s30 = sphi 0, %s28
      %s40 = sphi 0, %s42
      %s43 = sphi 0, %s40
      %s44 = sphi 0, %s43
      %s60 = sphi 0, %s44
      %s68 = sphi 0, %s70
      %s71 = sphi 0, %s68
      %s72 = sphi 0, %s71
      %s88 = sphi 0, %s72
      %s92 = sphi 0, %s92
      %s94 = sphi 0, %s92
      %s95 = sphi 0, %s94
      %s109 = sphi 0, %s95
      %s113 = sphi 0, %s113
      %s115 = sphi 0, %s113
      %s116 = sphi 0, %s115
      %s130 = sphi 0, %s116
      %s134 = sphi 0, %s134
      %s136 = sphi 0, %s134
      %s137 = sphi 0, %s136
      %s151 = sphi 0, %s137
      %s159 = sphi 0, %s161
      %s162 = sphi 0, %s159
      %s163 = sphi 0, %s162
      %s179 = sphi 0, %s163
    $region4: #{tpu_custom_call.1} parent=1 // loop_header_branch
      %21 = sbr.rel (%p19) target = $region8
    $region5: #{tpu_custom_call.1} parent=1 // loop_body
      %s23 = ssub.s32 %s18, 1
      %s24 = ssub.s32 %s18, 2
      %s31 = sadd.s32 1, %s26
      %p32 = scmp.ge.s32.totalorder %s31, 1
      %s33 = scalar_select %p32, 0, %s31
      %s34 = sadd.s32 1, %s25
      %s35 = scalar_select %p32, %s34, %s25
      %p36 = scmp.ge.s32.totalorder %s35, 2
      %s37 = scalar_select %p36, 0, %s35
      %s38 = ssub.s32 %s25, %s37
      %p39 = scmp.eq.s32.totalorder %s38, 0
      %s41 = sadd.s32 %s40, 1
      %s42 = scalar_select %p39, %s40, %s41
      %p45 = pneg %p39
      %p46 = scmp.eq.s32.totalorder %s18, 1
      %p47 = por %p45, %p46
      %p48 = scmp.ne.s32.totalorder %s40, %s43
      %p49 = scmp.eq.s32.totalorder %s18, 0
      %p50 = por %p48, %p49
      %p51 = scmp.ne.s32.totalorder %s40, %s43
      %p52 = scmp.eq.s32.totalorder %s23, 1
      %p53 = por %p51, %p52
      %p54 = scmp.ne.s32.totalorder %s43, %s44
      %p55 = scmp.eq.s32.totalorder %s23, 0
      %p56 = por %p54, %p55
      %p57 = scmp.ne.s32.totalorder %s43, %s44
      %p58 = scmp.eq.s32.totalorder %s24, 1
      %p59 = por %p57, %p58
      %p61 = scmp.ne.s32.totalorder %s44, %s60
      %p62 = scmp.eq.s32.totalorder %s24, 0
      %p63 = por %p61, %p62
      %s64 = ssub.s32 %s25, %s37
      %s65 = ssub.s32 %s26, %s33
      %s66 = sor.u32 %s64, %s65
      %p67 = scmp.eq.s32.totalorder %s66, 0
      %s69 = sadd.s32 %s68, 1
      %s70 = scalar_select %p67, %s68, %s69
      %p73 = pneg %p67
      %p74 = scmp.eq.s32.totalorder %s18, 1
      %p75 = por %p73, %p74
      %p76 = scmp.ne.s32.totalorder %s68, %s71
      %p77 = scmp.eq.s32.totalorder %s18, 0
      %p78 = por %p76, %p77
      %p79 = scmp.ne.s32.totalorder %s68, %s71
      %p80 = scmp.eq.s32.totalorder %s23, 1
      %p81 = por %p79, %p80
      %p82 = scmp.ne.s32.totalorder %s71, %s72
      %p83 = scmp.eq.s32.totalorder %s23, 0
      %p84 = por %p82, %p83
      %p85 = scmp.ne.s32.totalorder %s71, %s72
      %p86 = scmp.eq.s32.totalorder %s24, 1
      %p87 = por %p85, %p86
      %p89 = scmp.ne.s32.totalorder %s72, %s88
      %p90 = scmp.eq.s32.totalorder %s24, 0
      %p91 = por %p89, %p90
      %s93 = sadd.s32 %s92, 1
      %p96 = scmp.eq.s32.totalorder %s18, 1
      %p97 = scmp.ne.s32.totalorder %s92, %s94
      %p98 = scmp.eq.s32.totalorder %s18, 0
      %p99 = por %p97, %p98
      %p100 = scmp.ne.s32.totalorder %s92, %s94
      %p101 = scmp.eq.s32.totalorder %s23, 1
      %p102 = por %p100, %p101
      %p103 = scmp.ne.s32.totalorder %s94, %s95
      %p104 = scmp.eq.s32.totalorder %s23, 0
      %p105 = por %p103, %p104
      %p106 = scmp.ne.s32.totalorder %s94, %s95
      %p107 = scmp.eq.s32.totalorder %s24, 1
      %p108 = por %p106, %p107
      %p110 = scmp.ne.s32.totalorder %s95, %s109
      %p111 = scmp.eq.s32.totalorder %s24, 0
      %p112 = por %p110, %p111
      %s114 = sadd.s32 %s113, 1
      %p117 = scmp.eq.s32.totalorder %s18, 1
      %p118 = scmp.ne.s32.totalorder %s113, %s115
      %p119 = scmp.eq.s32.totalorder %s18, 0
      %p120 = por %p118, %p119
      %p121 = scmp.ne.s32.totalorder %s113, %s115
      %p122 = scmp.eq.s32.totalorder %s23, 1
      %p123 = por %p121, %p122
      %p124 = scmp.ne.s32.totalorder %s115, %s116
      %p125 = scmp.eq.s32.totalorder %s23, 0
      %p126 = por %p124, %p125
      %p127 = scmp.ne.s32.totalorder %s115, %s116
      %p128 = scmp.eq.s32.totalorder %s24, 1
      %p129 = por %p127, %p128
      %p131 = scmp.ne.s32.totalorder %s116, %s130
      %p132 = scmp.eq.s32.totalorder %s24, 0
      %p133 = por %p131, %p132
      %s135 = sadd.s32 %s134, 1
      %p138 = scmp.eq.s32.totalorder %s18, 1
      %p139 = scmp.ne.s32.totalorder %s134, %s136
      %p140 = scmp.eq.s32.totalorder %s18, 0
      %p141 = por %p139, %p140
      %p142 = scmp.ne.s32.totalorder %s134, %s136
      %p143 = scmp.eq.s32.totalorder %s23, 1
      %p144 = por %p142, %p143
      %p145 = scmp.ne.s32.totalorder %s136, %s137
      %p146 = scmp.eq.s32.totalorder %s23, 0
      %p147 = por %p145, %p146
      %p148 = scmp.ne.s32.totalorder %s136, %s137
      %p149 = scmp.eq.s32.totalorder %s24, 1
      %p150 = por %p148, %p149
      %p152 = scmp.ne.s32.totalorder %s137, %s151
      %p153 = scmp.eq.s32.totalorder %s24, 0
      %p154 = por %p152, %p153
      %s155 = ssub.s32 %s25, %s37
      %s156 = ssub.s32 %s26, %s33
      %s157 = sor.u32 %s155, %s156
      %p158 = scmp.eq.s32.totalorder %s157, 0
      %s160 = sadd.s32 %s159, 1
      %s161 = scalar_select %p158, %s159, %s160
      %p164 = pneg %p158
      %p165 = scmp.eq.s32.totalorder %s18, 1
      %p166 = por %p164, %p165
      %p167 = scmp.ne.s32.totalorder %s159, %s162
      %p168 = scmp.eq.s32.totalorder %s18, 0
      %p169 = por %p167, %p168
      %p170 = scmp.ne.s32.totalorder %s159, %s162
      %p171 = scmp.eq.s32.totalorder %s23, 1
      %p172 = por %p170, %p171
      %p173 = scmp.ne.s32.totalorder %s162, %s163
      %p174 = scmp.eq.s32.totalorder %s23, 0
      %p175 = por %p173, %p174
      %p176 = scmp.ne.s32.totalorder %s162, %s163
      %p177 = scmp.eq.s32.totalorder %s24, 1
      %p178 = por %p176, %p177
      %p180 = scmp.ne.s32.totalorder %s163, %s179
      %p181 = scmp.eq.s32.totalorder %s24, 0
      %p182 = por %p180, %p181
      %p183 = scmp.le.s32.totalorder 1, %s18
      %p184 = scmp.lt.s32.totalorder %s18, 3
      %p185 = pnand %p183, %p184
      %p186 = pneg %p185
      // Predicated region
      $region9: #{tpu_custom_call.1} parent=5 // pred_check
        _
      $region10: #{tpu_custom_call.1} parent=5 // pred_check_branch
        %188 = sbr.rel (%p185) target = $region12
      $region11: #{tpu_custom_call.1} parent=5 // pred_region
        %s189 = ssub.s32 %s18, 1
        // Predicated region
        $region13: #{tpu_custom_call.1} parent=11 // pred_check
          %p190 = pneg %p105
        $region14: #{tpu_custom_call.1} parent=11 // pred_check_branch
          %192 = sbr.rel (%p190) target = $region16
        $region15: #{tpu_custom_call.1} parent=11 // pred_region
          %194 = vsyncadd [#allocation6], 0
          %s195 = sshll.u32 %s2, 4
          %s196 = int_to_ptr.hbm [resolvable:$true] %s195
          %s197 = sshll.u32 [#allocation5], 4
          %s198 = int_to_ptr.vmem [resolvable:$true] %s197
          %203 = dma.hbm_to_vmem [thread:$0]  %s196, 2560, %s198, [#allocation6], 128, 128, 8
        $region16: #{tpu_custom_call.1} parent=11 // pred_fallthru
          _
        // Predicated region
        $region17: #{tpu_custom_call.1} parent=11 // pred_check
          %p204 = pneg %p126
        $region18: #{tpu_custom_call.1} parent=11 // pred_check_branch
          %206 = sbr.rel (%p204) target = $region20
        $region19: #{tpu_custom_call.1} parent=11 // pred_region
          _
        $region20: #{tpu_custom_call.1} parent=11 // pred_fallthru
          _
        // Predicated region
        $region21: #{tpu_custom_call.1} parent=11 // pred_check
          %p207 = pneg %p147
        $region22: #{tpu_custom_call.1} parent=11 // pred_check_branch
          %209 = sbr.rel (%p207) target = $region24
        $region23: #{tpu_custom_call.1} parent=11 // pred_region
          %211 = vsyncadd [#allocation6], 0
          %s212 = sshll.u32 %s4, 4
          %s213 = int_to_ptr.hbm [resolvable:$true] %s212
          %s214 = sshll.u32 [#allocation7], 4
          %s215 = int_to_ptr.vmem [resolvable:$true] %s214
          %220 = dma.hbm_to_vmem [thread:$0]  %s213, 256, %s215, [#allocation6], 128, 128, 8
        $region24: #{tpu_custom_call.1} parent=11 // pred_fallthru
          _
      $region12: #{tpu_custom_call.1} parent=5 // pred_fallthru
        _
      %p221 = scmp.lt.s32.totalorder %s18, 2
      // Predicated region
      $region25: #{tpu_custom_call.1} parent=5 // pred_check
        %p222 = pneg %p221
      $region26: #{tpu_custom_call.1} parent=5 // pred_check_branch
        %224 = sbr.rel (%p222) target = $region28
      $region27: #{tpu_custom_call.1} parent=5 // pred_region
        // Predicated region
        $region29: #{tpu_custom_call.1} parent=27 // pred_check
          %p225 = pneg %p50
        $region30: #{tpu_custom_call.1} parent=27 // pred_check_branch
          %227 = sbr.rel (%p225) target = $region32
        $region31: #{tpu_custom_call.1} parent=27 // pred_region
          %p228 = scmp.lt.s32.totalorder %s25, 1
          %s229 = scalar_select %p228, %s25, 1
          %s230 = smul.addr %s229, 4
          %s231 = scalar_lea.vmem %s0, %s230
        $region32: #{tpu_custom_call.1} parent=27 // pred_fallthru
          _
        // Predicated region
        $region33: #{tpu_custom_call.1} parent=27 // pred_check
          %p232 = pneg %p78
        $region34: #{tpu_custom_call.1} parent=27 // pred_check_branch
          %234 = sbr.rel (%p232) target = $region36
        $region35: #{tpu_custom_call.1} parent=27 // pred_region
          %s235 = sand.u32 %s68, 1
          %s236 = scalar_lea.sflag [#allocation3], %s235
          %s237 = sand.u32 %s68, 1
          %s238 = smul.addr %s237, 8
          %s239 = scalar_lea.vmem [#allocation2], %s238
          %241 = vsyncadd %s236, 0
          %s242 = sadd.s32 %s26, %s25
          %s243 = smul.addr %s242, 8
          %s244 = scalar_lea.hbm %s1, %s243
          %s246 = sshll.u32 %s244, 4
          %s247 = int_to_ptr.hbm [resolvable:$true] %s246
          %s248 = sshll.u32 %s239, 4
          %s249 = int_to_ptr.vmem [resolvable:$true] %s248
          %251 = dma.hbm_to_vmem [thread:$0]  %s247, 128, %s249, %s236
        $region36: #{tpu_custom_call.1} parent=27 // pred_fallthru
          _
      $region28: #{tpu_custom_call.1} parent=5 // pred_fallthru
        _
      %p252 = scmp.le.s32.totalorder 1, %s18
      %p253 = scmp.lt.s32.totalorder %s18, 3
      %p254 = pnand %p252, %p253
      %p255 = pneg %p254
      // Predicated region
      $region37: #{tpu_custom_call.1} parent=5 // pred_check
        _
      $region38: #{tpu_custom_call.1} parent=5 // pred_check_branch
        %257 = sbr.rel (%p254) target = $region40
      $region39: #{tpu_custom_call.1} parent=5 // pred_region
        %s258 = ssub.s32 %s18, 1
        %s259 = sand.u32 %s71, 1
        %s260 = scalar_lea.sflag [#allocation3], %s259
        %s261 = sand.u32 %s71, 1
        %s262 = smul.addr %s261, 8
        %s263 = scalar_lea.vmem [#allocation2], %s262
        // Predicated region
        $region41: #{tpu_custom_call.1} parent=39 // pred_check
          %p264 = pneg %p84
        $region42: #{tpu_custom_call.1} parent=39 // pred_check_branch
          %266 = sbr.rel (%p264) target = $region44
        $region43: #{tpu_custom_call.1} parent=39 // pred_region
          %268 = dma.done %s260, 128
        $region44: #{tpu_custom_call.1} parent=39 // pred_fallthru
          _
        // Predicated region
        $region45: #{tpu_custom_call.1} parent=39 // pred_check
          %p269 = pneg %p105
        $region46: #{tpu_custom_call.1} parent=39 // pred_check_branch
          %271 = sbr.rel (%p269) target = $region48
        $region47: #{tpu_custom_call.1} parent=39 // pred_region
          %273 = dma.done [#allocation6], 2560
        $region48: #{tpu_custom_call.1} parent=39 // pred_fallthru
          _
        // Predicated region
        $region49: #{tpu_custom_call.1} parent=39 // pred_check
          %p274 = pneg %p147
        $region50: #{tpu_custom_call.1} parent=39 // pred_check_branch
          %276 = sbr.rel (%p274) target = $region52
        $region51: #{tpu_custom_call.1} parent=39 // pred_region
          %278 = dma.done [#allocation6], 256
        $region52: #{tpu_custom_call.1} parent=39 // pred_fallthru
          _
        %p279 = scmp.lt.s32.totalorder %s27, 1
        %s280 = scalar_select %p279, %s27, 1
        %s281 = smul.addr %s280, 4
        %s282 = scalar_lea.vmem %s0, %s281
        %p283 = pneg %p56
        %p284 = pneg %p53
        %s285 = sand.u32 %s71, 1
        %s286 = scalar_lea.sflag [#allocation3], %s285
        %s287 = sand.u32 %s71, 1
        %s288 = smul.addr %s287, 8
        %s289 = scalar_lea.vmem [#allocation2], %s288
        %p290 = pneg %p84
        %p291 = pneg %p81
        %p292 = pneg %p105
        %p293 = pneg %p102
        %p294 = pneg %p126
        %p295 = pneg %p123
        %p296 = pneg %p147
        %p297 = pneg %p144
        %p298 = pneg %p175
        %p299 = pneg %p172
        %s300 = sand.u32 %s162, 1
        %s301 = scalar_lea.sflag [#allocation4], %s300
        %s302 = sand.u32 %s162, 1
        %s303 = smul.addr %s302, 8
        %s304 = scalar_lea.vmem [#allocation8], %s303
        %p305 = scmp.lt.s32.totalorder %s27, 1
        %s306 = scalar_select %p305, %s27, 1
        %s307 = smul.addr %s306, 4
        %s308 = scalar_lea.vmem %s0, %s307
        %v309 = vld [vmem:[%s308] sm:$0x7]
        %v310 = vld [vmem:[%s263] sm:$0xff]
        %v311 = vld [vmem:[%s3] sm:$0xff]
        %v312 = vld [vmem:[%s3 + $0x8] sm:$0xff]
        %v313 = vld [vmem:[#allocation7] sm:$0x1]
        %v314 = vperm.slane %v313, 0
        %vm315 = vcmask 130048
        %v317 = vsel %vm315, %v310, 0
        %319 = vmatpush.msra.mxu0 0.0
        %320 = vmatpush.msra.mxu0 0.0
        %321 = vmatpush.msra.mxu0 0.0
        %322 = vmatpush.msra.mxu0 0.0
        %323 = vmatpush.msra.mxu0 0.0
        %324 = vmatpush.msra.mxu0 0.0
        %325 = vmatpush.msra.mxu0 0.0
        %326 = vmatpush.msra.mxu0 0.0
        %327 = vmatpush.msra.mxu0 0.0
        %328 = vmatpush.msra.mxu0 0.0
        %329 = vmatpush.msra.mxu0 0.0
        %330 = vmatpush.msra.mxu0 0.0
        %331 = vmatpush.msra.mxu0 0.0
        %332 = vmatpush.msra.mxu0 0.0
        %333 = vmatpush.msra.mxu0 %v312
        %334 = vmatpush.msra.mxu0 %v311
        %335 = vmatmul.f32.gmra.mxu0 %v317
        %v336 = vpop.f32.mrf.mxu0
        %v337 = vadd.f32 %v314, %v336
        %338 = vdwg.mxu0
        %vm339 = vcmask 261120
        %v340 = vsel %vm339, %v337, 0.0
        %341 = vadd.xlane.f32.xlu0 %v340
        %v342 = vpop.xlane.xlu0 %341
        %v343 = vrcp.pop 32.0
        %v344 = vmul.f32 32.0, %v343
        %v345 = vsub.f32 1.0, %v344
        %v346 = vmul.f32 %v343, %v345
        %v347 = vadd.f32 %v343, %v346
        %vm348 = vweird.f32 %v343
        %v349 = vsel %vm348, %v343, %v347
        %v350 = vmul.f32 %v342, %v349
        %v351 = vsub.f32 %v337, %v350
        %v352 = vmul.f32 %v351, %v351
        %v353 = vsel %vm339, %v352, 0.0
        %354 = vadd.xlane.f32.xlu0 %v353
        %v355 = vpop.xlane.xlu0 %354
        %v356 = vmul.f32 %v355, %v349
        %v357 = vadd.f32 %v356, 1e-05
        %v358 = vrsqrt.pop %v357
        %v359 = vmul.f32 %v358, %v357
        %v360 = vmul.f32 %v359, %v358
        %v361 = vmul.f32 0.5, %v360
        %v362 = vsub.f32 1.5, %v361
        %v363 = vmul.f32 %v358, %v362
        %vm364 = vweird.f32 %v357
        %vm365 = vweird.f32 %v358
        %vm366 = vmor %vm364, %vm365
        %v367 = vsel %vm366, %v358, %v363
        %v368 = vmul.f32 %v351, %v367
        %v369 = vld [vmem:[#allocation7 + $0x1] sm:$0x1]
        %v370 = vperm.slane %v369, 0
        %v371 = vmul.f32 %v368, %v370
        %v372 = vld [vmem:[#allocation7 + $0x2] sm:$0x1]
        %v373 = vperm.slane %v372, 0
        %v374 = vadd.f32 %v371, %v373
        %vm375 = vcmp.gt.f32.partialorder %v374, 0.0
        %v376 = vmul.f32 %v374, 0.01
        %v377 = vsel %vm375, %v374, %v376
        %v378 = vld [vmem:[#allocation5] sm:$0xff]
        %v379 = vld [vmem:[#allocation5 + $0x8] sm:$0xff]
        %v380 = vld [vmem:[#allocation5 + $0x10] sm:$0xff]
        %v381 = vld [vmem:[#allocation5 + $0x18] sm:$0xff]
        %v383 = vsel %vm339, %v377, 0
        %385 = vmatpush.msra.mxu0 0.0
        %386 = vmatpush.msra.mxu0 0.0
        %387 = vmatpush.msra.mxu0 0.0
        %388 = vmatpush.msra.mxu0 0.0
        %389 = vmatpush.msra.mxu0 0.0
        %390 = vmatpush.msra.mxu0 0.0
        %391 = vmatpush.msra.mxu0 0.0
        %392 = vmatpush.msra.mxu0 0.0
        %393 = vmatpush.msra.mxu0 0.0
        %394 = vmatpush.msra.mxu0 0.0
        %395 = vmatpush.msra.mxu0 0.0
        %396 = vmatpush.msra.mxu0 0.0
        %397 = vmatpush.msra.mxu0 %v381
        %398 = vmatpush.msra.mxu0 %v380
        %399 = vmatpush.msra.mxu0 %v379
        %400 = vmatpush.msra.mxu0 %v378
        %401 = vmatmul.f32.gmra.mxu0 %v383
        %v402 = vpop.f32.mrf.mxu0
        %v403 = vadd.f32 0.0, %v402
        %404 = vdwg.mxu0
        %v405 = vperm.slane %v309, 1
        %v406 = vadd.f32 %v405, %v403
        %v407 = vsel %vm339, %v406, 0.0
        %408 = vadd.xlane.f32.xlu0 %v407
        %v409 = vpop.xlane.xlu0 %408
        %v410 = vmul.f32 %v409, %v349
        %v411 = vsub.f32 %v406, %v410
        %v412 = vmul.f32 %v411, %v411
        %v413 = vsel %vm339, %v412, 0.0
        %414 = vadd.xlane.f32.xlu0 %v413
        %v415 = vpop.xlane.xlu0 %414
        %v416 = vmul.f32 %v415, %v349
        %v417 = vadd.f32 %v416, 1e-05
        %v418 = vrsqrt.pop %v417
        %v419 = vmul.f32 %v418, %v417
        %v420 = vmul.f32 %v419, %v418
        %v421 = vmul.f32 0.5, %v420
        %v422 = vsub.f32 1.5, %v421
        %v423 = vmul.f32 %v418, %v422
        %vm424 = vweird.f32 %v417
        %vm425 = vweird.f32 %v418
        %vm426 = vmor %vm424, %vm425
        %v427 = vsel %vm426, %v418, %v423
        %v428 = vmul.f32 %v411, %v427
        %v429 = vld [vmem:[#allocation7 + $0x3] sm:$0x1]
        %v430 = vperm.slane %v429, 0
        %v431 = vmul.f32 %v428, %v430
        %v432 = vld [vmem:[#allocation7 + $0x4] sm:$0x1]
        %v433 = vperm.slane %v432, 0
        %v434 = vadd.f32 %v431, %v433
        %vm435 = vcmp.gt.f32.partialorder %v434, 0.0
        %v436 = vmul.f32 %v434, 0.01
        %v437 = vsel %vm435, %v434, %v436
        %s438 = scalar_lea.vmem [#allocation5], 32
        %v439 = vld [vmem:[%s438] sm:$0xff]
        %v440 = vld [vmem:[%s438 + $0x8] sm:$0xff]
        %v441 = vld [vmem:[%s438 + $0x10] sm:$0xff]
        %v442 = vld [vmem:[%s438 + $0x18] sm:$0xff]
        %443 = vmatpush.msra.mxu0 0.0
        %444 = vmatpush.msra.mxu0 0.0
        %445 = vmatpush.msra.mxu0 0.0
        %446 = vmatpush.msra.mxu0 0.0
        %447 = vmatpush.msra.mxu0 0.0
        %448 = vmatpush.msra.mxu0 0.0
        %449 = vmatpush.msra.mxu0 0.0
        %450 = vmatpush.msra.mxu0 0.0
        %451 = vmatpush.msra.mxu0 0.0
        %452 = vmatpush.msra.mxu0 0.0
        %453 = vmatpush.msra.mxu0 0.0
        %454 = vmatpush.msra.mxu0 0.0
        %455 = vmatpush.msra.mxu0 %v442
        %456 = vmatpush.msra.mxu0 %v441
        %457 = vmatpush.msra.mxu0 %v440
        %458 = vmatpush.msra.mxu0 %v439
        %459 = vmatmul.f32.gmra.mxu0 %v383
        %v460 = vpop.f32.mrf.mxu0
        %v461 = vadd.f32 0.0, %v460
        %462 = vdwg.mxu0
        %v463 = vperm.slane %v309, 2
        %v464 = vadd.f32 %v463, %v461
        %v465 = vsel %vm339, %v464, 0.0
        %466 = vadd.xlane.f32.xlu0 %v465
        %v467 = vpop.xlane.xlu0 %466
        %v468 = vmul.f32 %v467, %v349
        %v469 = vsub.f32 %v464, %v468
        %v470 = vmul.f32 %v469, %v469
        %v471 = vsel %vm339, %v470, 0.0
        %472 = vadd.xlane.f32.xlu0 %v471
        %v473 = vpop.xlane.xlu0 %472
        %v474 = vmul.f32 %v473, %v349
        %v475 = vadd.f32 %v474, 1e-05
        %v476 = vrsqrt.pop %v475
        %v477 = vmul.f32 %v476, %v475
        %v478 = vmul.f32 %v477, %v476
        %v479 = vmul.f32 0.5, %v478
        %v480 = vsub.f32 1.5, %v479
        %v481 = vmul.f32 %v476, %v480
        %vm482 = vweird.f32 %v475
        %vm483 = vweird.f32 %v476
        %vm484 = vmor %vm482, %vm483
        %v485 = vsel %vm484, %v476, %v481
        %v486 = vmul.f32 %v469, %v485
        %v487 = vld [vmem:[#allocation7 + $0x5] sm:$0x1]
        %v488 = vperm.slane %v487, 0
        %v489 = vmul.f32 %v486, %v488
        %v490 = vld [vmem:[#allocation7 + $0x6] sm:$0x1]
        %v491 = vperm.slane %v490, 0
        %v492 = vadd.f32 %v489, %v491
        %vm493 = vcmp.gt.f32.partialorder %v492, 0.0
        %v494 = vmul.f32 %v492, 0.01
        %v495 = vsel %vm493, %v492, %v494
        %s496 = scalar_lea.vmem [#allocation5], 64
        %v497 = vld [vmem:[%s496] sm:$0xff]
        %v498 = vld [vmem:[%s496 + $0x8] sm:$0xff]
        %v499 = vld [vmem:[%s496 + $0x10] sm:$0xff]
        %v500 = vld [vmem:[%s496 + $0x18] sm:$0xff]
        %v501 = vld [vmem:[#allocation7 + $0x7] sm:$0x1]
        %v502 = vperm.slane %v501, 0
        %v504 = vsel %vm339, %v437, 0
        %506 = vmatpush.msra.mxu0 0.0
        %507 = vmatpush.msra.mxu0 0.0
        %508 = vmatpush.msra.mxu0 0.0
        %509 = vmatpush.msra.mxu0 0.0
        %510 = vmatpush.msra.mxu0 0.0
        %511 = vmatpush.msra.mxu0 0.0
        %512 = vmatpush.msra.mxu0 0.0
        %513 = vmatpush.msra.mxu0 0.0
        %514 = vmatpush.msra.mxu0 0.0
        %515 = vmatpush.msra.mxu0 0.0
        %516 = vmatpush.msra.mxu0 0.0
        %517 = vmatpush.msra.mxu0 0.0
        %518 = vmatpush.msra.mxu0 %v500
        %519 = vmatpush.msra.mxu0 %v499
        %520 = vmatpush.msra.mxu0 %v498
        %521 = vmatpush.msra.mxu0 %v497
        %522 = vmatmul.f32.gmra.mxu0 %v504
        %v523 = vpop.f32.mrf.mxu0
        %v524 = vadd.f32 %v502, %v523
        %525 = vdwg.mxu0
        %v526 = vtanh.pop %v524
        %s527 = scalar_lea.vmem [#allocation5], 96
        %v528 = vld [vmem:[%s527] sm:$0xff]
        %v529 = vld [vmem:[%s527 + $0x8] sm:$0xff]
        %v530 = vld [vmem:[%s527 + $0x10] sm:$0xff]
        %v531 = vld [vmem:[%s527 + $0x18] sm:$0xff]
        %v532 = vld [vmem:[#allocation7 + $0x8] sm:$0x1]
        %v533 = vperm.slane %v532, 0
        %v535 = vsel %vm339, %v495, 0
        %537 = vmatpush.msra.mxu0 0.0
        %538 = vmatpush.msra.mxu0 0.0
        %539 = vmatpush.msra.mxu0 0.0
        %540 = vmatpush.msra.mxu0 0.0
        %541 = vmatpush.msra.mxu0 0.0
        %542 = vmatpush.msra.mxu0 0.0
        %543 = vmatpush.msra.mxu0 0.0
        %544 = vmatpush.msra.mxu0 0.0
        %545 = vmatpush.msra.mxu0 0.0
        %546 = vmatpush.msra.mxu0 0.0
        %547 = vmatpush.msra.mxu0 0.0
        %548 = vmatpush.msra.mxu0 0.0
        %549 = vmatpush.msra.mxu0 %v531
        %550 = vmatpush.msra.mxu0 %v530
        %551 = vmatpush.msra.mxu0 %v529
        %552 = vmatpush.msra.mxu0 %v528
        %553 = vmatmul.f32.gmra.mxu0 %v535
        %v554 = vpop.f32.mrf.mxu0
        %v555 = vadd.f32 %v533, %v554
        %556 = vdwg.mxu0
        %v557 = vxor.u32 %v555, 2147483648
        %v558 = vmul.f32 %v557, 1.442695
        %v559 = vpow.pop %v558
        %v560 = vadd.f32 %v559, 1.0
        %v561 = vrcp.pop %v560
        %v562 = vmul.f32 %v560, %v561
        %v563 = vsub.f32 1.0, %v562
        %v564 = vmul.f32 %v561, %v563
        %v565 = vadd.f32 %v561, %v564
        %vm566 = vweird.f32 %v560
        %vm567 = vweird.f32 %v561
        %vm568 = vmor %vm566, %vm567
        %v569 = vsel %vm568, %v561, %v565
        %v570 = vand.u32 2147483647, %v560
        %vm571 = vcmp.eq.f32.partialorder %v570, 8.507059e+37
        %v572 = vand.u32 %v560, 2147483648
        %v573 = vor.u32 1.1754944e-38, %v572
        %v574 = vsel %vm571, %v573, %v569
        %v575 = vmul.f32 1.0, %v574
        %v576 = vmul.f32 %v377, %v526
        %v577 = vmul.f32 %v576, %v575
        %v578 = vperm.slane %v309, 0
        %v579 = vadd.f32 %v578, %v577
        %s580 = scalar_lea.vmem [#allocation5], 128
        %v581 = vld [vmem:[%s580] sm:$0xff]
        %v582 = vld [vmem:[%s580 + $0x8] sm:$0xff]
        %v583 = vld [vmem:[%s580 + $0x10] sm:$0xff]
        %v584 = vld [vmem:[%s580 + $0x18] sm:$0xff]
        %v585 = vld [vmem:[#allocation7 + $0x9] sm:$0x1]
        %v586 = vperm.slane %v585, 0
        %v588 = vsel %vm339, %v579, 0
        %590 = vmatpush.msra.mxu0 0.0
        %591 = vmatpush.msra.mxu0 0.0
        %592 = vmatpush.msra.mxu0 0.0
        %593 = vmatpush.msra.mxu0 0.0
        %594 = vmatpush.msra.mxu0 0.0
        %595 = vmatpush.msra.mxu0 0.0
        %596 = vmatpush.msra.mxu0 0.0
        %597 = vmatpush.msra.mxu0 0.0
        %598 = vmatpush.msra.mxu0 0.0
        %599 = vmatpush.msra.mxu0 0.0
        %600 = vmatpush.msra.mxu0 0.0
        %601 = vmatpush.msra.mxu0 0.0
        %602 = vmatpush.msra.mxu0 %v584
        %603 = vmatpush.msra.mxu0 %v583
        %604 = vmatpush.msra.mxu0 %v582
        %605 = vmatpush.msra.mxu0 %v581
        %606 = vmatmul.f32.gmra.mxu0 %v588
        %v607 = vpop.f32.mrf.mxu0
        %v608 = vadd.f32 %v586, %v607
        %609 = vdwg.mxu0
        %v610 = vsel %vm339, %v608, 0.0
        %611 = vadd.xlane.f32.xlu0 %v610
        %v612 = vpop.xlane.xlu0 %611
        %v613 = vmul.f32 %v612, %v349
        %v614 = vsub.f32 %v608, %v613
        %v615 = vmul.f32 %v614, %v614
        %v616 = vsel %vm339, %v615, 0.0
        %617 = vadd.xlane.f32.xlu0 %v616
        %v618 = vpop.xlane.xlu0 %617
        %v619 = vmul.f32 %v618, %v349
        %v620 = vadd.f32 %v619, 1e-05
        %v621 = vrsqrt.pop %v620
        %v622 = vmul.f32 %v621, %v620
        %v623 = vmul.f32 %v622, %v621
        %v624 = vmul.f32 0.5, %v623
        %v625 = vsub.f32 1.5, %v624
        %v626 = vmul.f32 %v621, %v625
        %vm627 = vweird.f32 %v620
        %vm628 = vweird.f32 %v621
        %vm629 = vmor %vm627, %vm628
        %v630 = vsel %vm629, %v621, %v626
        %v631 = vmul.f32 %v614, %v630
        %v632 = vld [vmem:[#allocation7 + $0xa] sm:$0x1]
        %v633 = vperm.slane %v632, 0
        %v634 = vmul.f32 %v631, %v633
        %v635 = vld [vmem:[#allocation7 + $0xb] sm:$0x1]
        %v636 = vperm.slane %v635, 0
        %v637 = vadd.f32 %v634, %v636
        %vm638 = vcmp.gt.f32.partialorder %v637, 0.0
        %v639 = vmul.f32 %v637, 0.01
        %v640 = vsel %vm638, %v637, %v639
        %641 = vst.msk [vmem:[%s304] sm:$0xff] %vm339, %v640
        %s642 = sand.u32 %s162, 1
        %s643 = scalar_lea.sflag [#allocation4], %s642
        %s644 = sand.u32 %s162, 1
        %s645 = smul.addr %s644, 8
        %s646 = scalar_lea.vmem [#allocation8], %s645
        // Predicated region
        $region53: #{tpu_custom_call.1} parent=39 // pred_check
          %p647 = pneg %p172
        $region54: #{tpu_custom_call.1} parent=39 // pred_check_branch
          %649 = sbr.rel (%p647) target = $region56
        $region55: #{tpu_custom_call.1} parent=39 // pred_region
          %651 = vsyncadd %s643, 0
          %s652 = sadd.s32 %s28, %s27
          %s653 = smul.addr %s652, 8
          %s654 = scalar_lea.hbm %s5, %s653
          %s656 = sshll.u32 %s646, 4
          %s657 = int_to_ptr.vmem [resolvable:$true] %s656
          %s658 = sshll.u32 %s654, 4
          %s659 = int_to_ptr.hbm [resolvable:$true] %s658
          %661 = dma.vmem_to_hbm [thread:$0]  %s657, 128, %s659, %s643
        $region56: #{tpu_custom_call.1} parent=39 // pred_fallthru
          _
      $region40: #{tpu_custom_call.1} parent=5 // pred_fallthru
        _
      %p662 = scmp.le.s32.totalorder 2, %s18
      // Predicated region
      $region57: #{tpu_custom_call.1} parent=5 // pred_check
        %p663 = pneg %p662
      $region58: #{tpu_custom_call.1} parent=5 // pred_check_branch
        %665 = sbr.rel (%p663) target = $region60
      $region59: #{tpu_custom_call.1} parent=5 // pred_region
        %s666 = ssub.s32 %s18, 2
        // Predicated region
        $region61: #{tpu_custom_call.1} parent=59 // pred_check
          %p667 = pneg %p178
        $region62: #{tpu_custom_call.1} parent=59 // pred_check_branch
          %669 = sbr.rel (%p667) target = $region64
        $region63: #{tpu_custom_call.1} parent=59 // pred_region
          %s670 = sand.u32 %s163, 1
          %s671 = scalar_lea.sflag [#allocation4], %s670
          %s672 = sand.u32 %s163, 1
          %s673 = smul.addr %s672, 8
          %s674 = scalar_lea.vmem [#allocation8], %s673
          %676 = dma.done %s671, 128
        $region64: #{tpu_custom_call.1} parent=59 // pred_fallthru
          _
      $region60: #{tpu_custom_call.1} parent=5 // pred_fallthru
        _
    $region6: #{tpu_custom_call.1} parent=1 // loop_footer
      %s22 = sadd.s32 1, %s18
    $region7: #{tpu_custom_call.1} parent=1 // loop_footer_branch
      %17 = sbr.rel target = $region3
    $region8: #{tpu_custom_call.1} parent=1 // loop_exit
      _
    %677 = vsyncpa [#allocation3], 1
    %s678 = scalar_lea.sflag [#allocation3], 1
    %679 = vsyncpa %s678, 1
    %680 = vsyncpa [#allocation6], 1
    %681 = vsyncpa [#allocation4], 1
    %s682 = scalar_lea.sflag [#allocation4], 1
    %683 = vsyncpa %s682, 1

</llo_original>
